<compile_context>
chip_gen: v6e
topology: v6e:2x2x1
jax: 0.10.0
libtpu: 0.0.40
codegen_flags: <defaults>
</compile_context>

<pallas_src>
import jax
import jax.numpy as jnp
from jax.experimental import pallas as pl
from jax.experimental.pallas import tpu as pltpu

NOT_IN_PACK_VAL = -1000.0


def _pool_pack_kernel(pool_ref, pack_ref, w1_ref, b1_ref, w2_ref, b2_ref,
                      logits_ref, probs_ref):
    # Inner model: 2-layer MLP. bf16 operands on the MXU, f32 accumulation.
    pool_bf16 = pool_ref[...].astype(jnp.bfloat16)                       # (TB, C)
    h = jnp.dot(pool_bf16, w1_ref[...],
                preferred_element_type=jnp.float32) + b1_ref[...]        # (TB, H) f32
    h = jnp.maximum(h, 0.0)                                              # ReLU (f32 VPU)
    format_logits = jnp.dot(h.astype(jnp.bfloat16), w2_ref[...],
                            preferred_element_type=jnp.float32) + b2_ref[...]  # (TB, C)

    # PoolPackPickPredictor.forward: single select instead of mul/mul/add.
    masked = jnp.where(pack_ref[...] != 0.0, format_logits, NOT_IN_PACK_VAL)
    logits_ref[...] = masked

    # PoolPackPickPredictor.pick: numerically-stable softmax over the card axis.
    # Note: an all-zero pack row yields a uniform distribution (same as PyTorch ref).
    m = jnp.max(masked, axis=-1, keepdims=True)
    e = jnp.exp(masked - m)
    denom = jnp.sum(e, axis=-1, keepdims=True)
    probs_ref[...] = e * pl.reciprocal(denom, approx=True)               # EUP vrcp


def pool_pack_pick_predictor(pool, pack, w1, b1, w2, b2, *, tb=128):
    """Fused PoolPackPickPredictor.forward + .pick.

    Returns (masked_logits, pick_probs), both shape (batch, num_cards), f32.
    Batch is padded up to a multiple of the row tile internally.
    """
    B, C = pool.shape
    H = w1.shape[1]

    # Pad the batch axis so the 1-D grid divides exactly.
    bp = ((B + tb - 1) // tb) * tb
    if bp != B:
        pad = bp - B
        pool = jnp.pad(pool, ((0, pad), (0, 0)))
        pack = jnp.pad(pack, ((0, pad), (0, 0)))

    grid = (bp // tb,)

    row_in = pl.BlockSpec((tb, C), lambda i: (i, 0))          # batch-tiled, pipelined
    const = lambda shape: pl.BlockSpec(shape, lambda i: (0, 0))  # VMEM-resident weights

    logits, probs = pl.pallas_call(
        _pool_pack_kernel,
        out_shape=(
            jax.ShapeDtypeStruct((bp, C), jnp.float32),
            jax.ShapeDtypeStruct((bp, C), jnp.float32),
        ),
        grid_spec=pl.GridSpec(
            grid=grid,
            in_specs=[
                row_in,            # pool
                row_in,            # pack mask
                const((C, H)),     # W1 (bf16)
                const((1, H)),     # b1 (f32)
                const((H, C)),     # W2 (bf16)
                const((1, C)),     # b2 (f32)
            ],
            out_specs=[
                pl.BlockSpec((tb, C), lambda i: (i, 0)),
                pl.BlockSpec((tb, C), lambda i: (i, 0)),
            ],
        ),
        compiler_params=pltpu.CompilerParams(
            dimension_semantics=("parallel",),           # megacore split on v7x
            vmem_limit_bytes=48 * 1024 * 1024,           # headroom below v7x 64 MiB
        ),
    )(pool, pack, w1, b1, w2, b2)

    if bp != B:
        logits = logits[:B]
        probs = probs[:B]
    return logits, probs


if __name__ == "__main__":
    key = jax.random.PRNGKey(0)
    k_pool, k_pack, k_w1, k_b1, k_w2, k_b2 = jax.random.split(key, 6)

    # Batched decision instances (batch tile = 128 -> grid of 2 steps);
    # H = 256 keeps the first matmul's N a full v6e/v7x MXU tile.
    batch, num_cards, hidden = 256, 256, 256

    pool = jax.random.uniform(k_pool, (batch, num_cards), jnp.float32, 0.0, 3.0)
    pack = (jax.random.uniform(k_pack, (batch, num_cards)) < 0.1).astype(jnp.float32)
    w1 = (jax.random.normal(k_w1, (num_cards, hidden), jnp.float32) * 0.05
          ).astype(jnp.bfloat16)
    b1 = jax.random.normal(k_b1, (1, hidden), jnp.float32) * 0.01
    w2 = (jax.random.normal(k_w2, (hidden, num_cards), jnp.float32) * 0.05
          ).astype(jnp.bfloat16)
    b2 = jax.random.normal(k_b2, (1, num_cards), jnp.float32) * 0.01

    logits, probs = pool_pack_pick_predictor(pool, pack, w1, b1, w2, b2)
    jax.block_until_ready((logits, probs))

    # Reference in plain JAX with the same bf16-matmul / f32-accumulate math.
    h_ref = jnp.maximum(
        jnp.dot(pool.astype(jnp.bfloat16), w1,
                preferred_element_type=jnp.float32) + b1, 0.0)
    fl_ref = jnp.dot(h_ref.astype(jnp.bfloat16), w2,
                     preferred_element_type=jnp.float32) + b2
    logits_ref = jnp.where(pack != 0.0, fl_ref, NOT_IN_PACK_VAL)
    probs_ref = jax.nn.softmax(logits_ref, axis=-1)

    assert jnp.allclose(logits, logits_ref, atol=2e-2, rtol=2e-2), \
        float(jnp.max(jnp.abs(logits - logits_ref)))
    # Looser tolerance on probs: approx reciprocal (EUP) in the softmax denom.
    assert jnp.allclose(probs, probs_ref, atol=5e-3, rtol=2e-2), \
        float(jnp.max(jnp.abs(probs - probs_ref)))

    print("KERNEL_OK")
</pallas_src>

<mosaic_0001>
module attributes {stable_mosaic.version = 11 : i64} {
  func.func @_pool_pack_kernel(%arg0: i32, %arg1: memref<128x256xf32, #tpu.memory_space<vmem>>, %arg2: memref<128x256xf32, #tpu.memory_space<vmem>>, %arg3: memref<256x256xbf16, #tpu.memory_space<vmem>>, %arg4: memref<1x256xf32, #tpu.memory_space<vmem>>, %arg5: memref<256x256xbf16, #tpu.memory_space<vmem>>, %arg6: memref<1x256xf32, #tpu.memory_space<vmem>>, %arg7: memref<128x256xf32, #tpu.memory_space<vmem>>, %arg8: memref<128x256xf32, #tpu.memory_space<vmem>>) attributes {dimension_semantics = [#tpu.dimension_semantics<parallel>], iteration_bounds = array<i64: 2>, scalar_prefetch = 0 : i64, scratch_operands = 0 : i64, tpu.core_type = #tpu.core_type<tc>, window_params = [{transform_indices = @transform_0, window_bounds = array<i64: 128, 256>}, {transform_indices = @transform_1, window_bounds = array<i64: 128, 256>}, {pipeline_mode = #tpu.pipeline_mode<synchronous>, transform_indices = @transform_2, window_bounds = array<i64: 256, 256>}, {pipeline_mode = #tpu.pipeline_mode<synchronous>, transform_indices = @transform_3, window_bounds = array<i64: 1, 256>}, {pipeline_mode = #tpu.pipeline_mode<synchronous>, transform_indices = @transform_4, window_bounds = array<i64: 256, 256>}, {pipeline_mode = #tpu.pipeline_mode<synchronous>, transform_indices = @transform_5, window_bounds = array<i64: 1, 256>}, {transform_indices = @transform_6, window_bounds = array<i64: 128, 256>}, {transform_indices = @transform_7, window_bounds = array<i64: 128, 256>}]} {
    %c0 = arith.constant 0 : index
    %c0_0 = arith.constant 0 : index
    %0 = vector.load %arg1[%c0, %c0_0] : memref<128x256xf32, #tpu.memory_space<vmem>>, vector<128x256xf32>
    %1 = arith.truncf %0 : vector<128x256xf32> to vector<128x256xbf16>
    %c0_1 = arith.constant 0 : index
    %c0_2 = arith.constant 0 : index
    %2 = vector.load %arg3[%c0_1, %c0_2] : memref<256x256xbf16, #tpu.memory_space<vmem>>, vector<256x256xbf16>
    %cst = arith.constant dense<0.000000e+00> : vector<128x256xf32>
    %3 = tpu.matmul %1, %2, %cst {dimension_numbers = #tpu.dot_dimension_numbers<[1], [0], [0], [1], [0, 0, 1, 1], [], []>} : vector<128x256xbf16>, vector<256x256xbf16>, vector<128x256xf32> -> vector<128x256xf32>
    %c0_3 = arith.constant 0 : index
    %c0_4 = arith.constant 0 : index
    %4 = vector.load %arg4[%c0_3, %c0_4] : memref<1x256xf32, #tpu.memory_space<vmem>>, vector<1x256xf32>
    %5 = vector.broadcast %4 : vector<1x256xf32> to vector<128x256xf32>
    %6 = arith.addf %3, %5 : vector<128x256xf32>
    %cst_5 = arith.constant 0.000000e+00 : f32
    %7 = vector.broadcast %cst_5 : f32 to vector<128x256xf32>
    %8 = arith.maximumf %6, %7 : vector<128x256xf32>
    %9 = arith.truncf %8 : vector<128x256xf32> to vector<128x256xbf16>
    %c0_6 = arith.constant 0 : index
    %c0_7 = arith.constant 0 : index
    %10 = vector.load %arg5[%c0_6, %c0_7] : memref<256x256xbf16, #tpu.memory_space<vmem>>, vector<256x256xbf16>
    %cst_8 = arith.constant dense<0.000000e+00> : vector<128x256xf32>
    %11 = tpu.matmul %9, %10, %cst_8 {dimension_numbers = #tpu.dot_dimension_numbers<[1], [0], [0], [1], [0, 0, 1, 1], [], []>} : vector<128x256xbf16>, vector<256x256xbf16>, vector<128x256xf32> -> vector<128x256xf32>
    %c0_9 = arith.constant 0 : index
    %c0_10 = arith.constant 0 : index
    %12 = vector.load %arg6[%c0_9, %c0_10] : memref<1x256xf32, #tpu.memory_space<vmem>>, vector<1x256xf32>
    %13 = vector.broadcast %12 : vector<1x256xf32> to vector<128x256xf32>
    %14 = arith.addf %11, %13 : vector<128x256xf32>
    %c0_11 = arith.constant 0 : index
    %c0_12 = arith.constant 0 : index
    %15 = vector.load %arg2[%c0_11, %c0_12] : memref<128x256xf32, #tpu.memory_space<vmem>>, vector<128x256xf32>
    %cst_13 = arith.constant 0.000000e+00 : f32
    %16 = vector.broadcast %cst_13 : f32 to vector<128x256xf32>
    %17 = arith.cmpf one, %15, %16 : vector<128x256xf32>
    %cst_14 = arith.constant -1.000000e+03 : f32
    %18 = vector.broadcast %cst_14 : f32 to vector<128x256xf32>
    %19 = arith.select %17, %14, %18 : vector<128x256xi1>, vector<128x256xf32>
    %c0_15 = arith.constant 0 : index
    %c0_16 = arith.constant 0 : index
    %20 = vector.load %arg7[%c0_15, %c0_16] : memref<128x256xf32, #tpu.memory_space<vmem>>, vector<128x256xf32>
    tpu.vector_store %arg7[%c0_15, %c0_16], %19 {strides = array<i32>} : memref<128x256xf32, #tpu.memory_space<vmem>>, vector<128x256xf32>,
    %cst_17 = arith.constant dense<0xFF800000> : vector<128xf32>
    %21 = vector.multi_reduction <maximumf>, %19, %cst_17 [1] : vector<128x256xf32> to vector<128xf32>
    %22 = vector.shape_cast %21 : vector<128xf32> to vector<128x1xf32>
    %23 = vector.broadcast %22 : vector<128x1xf32> to vector<128x256xf32>
    %24 = arith.subf %19, %23 : vector<128x256xf32>
    %25 = math.exp %24 : vector<128x256xf32>
    %cst_18 = arith.constant dense<0.000000e+00> : vector<128xf32>
    %26 = vector.multi_reduction <add>, %25, %cst_18 [1] : vector<128x256xf32> to vector<128xf32>
    %27 = vector.shape_cast %26 : vector<128xf32> to vector<128x1xf32>
    %28 = tpu.reciprocal %27 {approx = true} : vector<128x1xf32> -> vector<128x1xf32>
    %29 = vector.broadcast %28 : vector<128x1xf32> to vector<128x256xf32>
    %30 = arith.mulf %25, %29 : vector<128x256xf32>
    %c0_19 = arith.constant 0 : index
    %c0_20 = arith.constant 0 : index
    %31 = vector.load %arg8[%c0_19, %c0_20] : memref<128x256xf32, #tpu.memory_space<vmem>>, vector<128x256xf32>
    tpu.vector_store %arg8[%c0_19, %c0_20], %30 {strides = array<i32>} : memref<128x256xf32, #tpu.memory_space<vmem>>, vector<128x256xf32>,
    return
  }
  func.func @transform_0(%arg0: i32) -> (i32, i32) {
    %c0_i32 = arith.constant 0 : i32
    %c0_i32_0 = arith.constant 0 : i32
    return %arg0, %c0_i32 : i32, i32
  }
  func.func @transform_1(%arg0: i32) -> (i32, i32) {
    %c0_i32 = arith.constant 0 : i32
    %c0_i32_0 = arith.constant 0 : i32
    return %arg0, %c0_i32 : i32, i32
  }
  func.func @transform_2(%arg0: i32) -> (i32, i32) {
    %c0_i32 = arith.constant 0 : i32
    %c0_i32_0 = arith.constant 0 : i32
    %c0_i32_1 = arith.constant 0 : i32
    return %c0_i32, %c0_i32_0 : i32, i32
  }
  func.func @transform_3(%arg0: i32) -> (i32, i32) {
    %c0_i32 = arith.constant 0 : i32
    %c0_i32_0 = arith.constant 0 : i32
    %c0_i32_1 = arith.constant 0 : i32
    return %c0_i32, %c0_i32_0 : i32, i32
  }
  func.func @transform_4(%arg0: i32) -> (i32, i32) {
    %c0_i32 = arith.constant 0 : i32
    %c0_i32_0 = arith.constant 0 : i32
    %c0_i32_1 = arith.constant 0 : i32
    return %c0_i32, %c0_i32_0 : i32, i32
  }
  func.func @transform_5(%arg0: i32) -> (i32, i32) {
    %c0_i32 = arith.constant 0 : i32
    %c0_i32_0 = arith.constant 0 : i32
    %c0_i32_1 = arith.constant 0 : i32
    return %c0_i32, %c0_i32_0 : i32, i32
  }
  func.func @transform_6(%arg0: i32) -> (i32, i32) {
    %c0_i32 = arith.constant 0 : i32
    %c0_i32_0 = arith.constant 0 : i32
    return %arg0, %c0_i32 : i32, i32
  }
  func.func @transform_7(%arg0: i32) -> (i32, i32) {
    %c0_i32 = arith.constant 0 : i32
    %c0_i32_0 = arith.constant 0 : i32
    return %arg0, %c0_i32 : i32, i32
  }
}

</mosaic_0001>

<llo_original>
// kernel: tpu_custom_call.1
$region0: #{tpu_custom_call.1}
  #allocation0 [shape = 'u32[]', space=smem, size = 0x4, offset = 0x4, fixed_abs, tag = 'smem constant byte address 0x4 - core index']
  #allocation1 [shape = 'u32[144,128]{1,0:T(1,128)}', space=vmem, size = 0x12000, scoped, tag = 'internal scratch']
  %s0 = inlined_call_operand.hbm [shape: f32[256,256], index: 0, kind: input, shape index: {}]
  %s1 = inlined_call_operand.hbm [shape: f32[256,256], index: 1, kind: input, shape index: {}]
  %s2 = inlined_call_operand.hbm [shape: bf16[256,256], index: 2, kind: input, shape index: {}]
  %s3 = inlined_call_operand.vmem [shape: f32[1,256], index: 3, kind: input, shape index: {}]
  %s4 = inlined_call_operand.hbm [shape: bf16[256,256], index: 4, kind: input, shape index: {}]
  %s5 = inlined_call_operand.vmem [shape: f32[1,256], index: 5, kind: input, shape index: {}]
  %s6 = inlined_call_operand.hbm [shape: f32[256,256], index: 6, kind: output, shape index: {0}]
  %s7 = inlined_call_operand.hbm [shape: f32[256,256], index: 7, kind: output, shape index: {1}]
  %8 = xla_tuple %s6, %s7
  %s9 = sld [smem:[#allocation0]]
  $region81: #{tpu_custom_call.1} parent=0
    _
  %s11 = ssub.s32 1, %s9
  %s12 = scalar_select 0, %s11, %s9
  $region1: #{tpu_custom_call.1} parent=0
    #allocation2 [shape = 'u8[262144]{0}', space=vmem, size = 0x40000, scoped, tag = 'input window, operand 0']
    #allocation3 [shape = 's32[2]{0}', space=sflag, size = 0x8, scoped, tag = 'scoped memory for tpu_custom_call.1']
    #allocation4 [shape = 's32[2]{0}', space=sflag, size = 0x8, scoped, tag = 'scoped memory for tpu_custom_call.1']
    #allocation5 [shape = 'u8[262144]{0}', space=vmem, size = 0x40000, scoped, tag = 'input window, operand 1']
    #allocation6 [shape = 's32[2]{0}', space=sflag, size = 0x8, scoped, tag = 'scoped memory for tpu_custom_call.1']
    #allocation7 [shape = 'u8[131072]{0}', space=vmem, size = 0x20000, scoped, tag = 'input window, operand 2, single buffered']
    #allocation8 [shape = 'u8[131072]{0}', space=vmem, size = 0x20000, scoped, tag = 'input window, operand 4, single buffered']
    #allocation9 [shape = 's32[1]{0}', space=sflag, size = 0x4, scoped, tag = 'scoped memory for tpu_custom_call.1']
    #allocation10 [shape = 'u8[262144]{0}', space=vmem, size = 0x40000, scoped, tag = 'output window, operand 0']
    #allocation11 [shape = 'u8[262144]{0}', space=vmem, size = 0x40000, scoped, tag = 'output window, operand 1']
    #allocation12 [shape = 's32[2]{0}', space=sflag, size = 0x8, scoped, tag = 'scoped memory for tpu_custom_call.1']
    %13 = vsyncpa [#allocation3], 0
    %s14 = scalar_lea.sflag [#allocation3], 1
    %15 = vsyncpa %s14, 0
    %16 = vsyncpa [#allocation6], 0
    %s17 = scalar_lea.sflag [#allocation6], 1
    %18 = vsyncpa %s17, 0
    %19 = vsyncpa [#allocation9], 0
    %20 = vsyncpa [#allocation4], 0
    %s21 = scalar_lea.sflag [#allocation4], 1
    %22 = vsyncpa %s21, 0
    %23 = vsyncpa [#allocation12], 0
    %s24 = scalar_lea.sflag [#allocation12], 1
    %25 = vsyncpa %s24, 0
    loop: start=0, step=1, limit=4
    $region2: #{tpu_custom_call.1} parent=1 // loop_pre_header
      _
    $region3: #{tpu_custom_call.1} parent=1 // loop_header
      %s27 = sphi 0, %s31
      %p28 = scmp.ge.s32.totalorder %s27, 4
      %s37 = sphi 0, %s39
      %s40 = sphi 0, %s37
      %s41 = sphi 0, %s40
      %s57 = sphi 0, %s41
      %s63 = sphi 0, %s65
      %s66 = sphi 0, %s63
      %s67 = sphi 0, %s66
      %s83 = sphi 0, %s67
      %s87 = sphi 0, %s87
      %s89 = sphi 0, %s87
      %s90 = sphi 0, %s89
      %s104 = sphi 0, %s90
      %s108 = sphi 0, %s108
      %s110 = sphi 0, %s108
      %s111 = sphi 0, %s110
      %s125 = sphi 0, %s111
      %s129 = sphi 0, %s129
      %s131 = sphi 0, %s129
      %s132 = sphi 0, %s131
      %s146 = sphi 0, %s132
      %s150 = sphi 0, %s150
      %s152 = sphi 0, %s150
      %s153 = sphi 0, %s152
      %s167 = sphi 0, %s153
      %s173 = sphi 0, %s175
      %s176 = sphi 0, %s173
      %s177 = sphi 0, %s176
      %s193 = sphi 0, %s177
      %s199 = sphi 0, %s201
      %s202 = sphi 0, %s199
      %s203 = sphi 0, %s202
      %s219 = sphi 0, %s203
    $region4: #{tpu_custom_call.1} parent=1 // loop_header_branch
      %30 = sbr.rel (%p28) target = $region8
    $region5: #{tpu_custom_call.1} parent=1 // loop_body
      %s32 = ssub.s32 %s27, 1
      %s33 = ssub.s32 %s27, 2
      %s34 = sadd.s32 %s27, 1
      %s35 = ssub.s32 %s27, %s34
      %p36 = scmp.eq.s32.totalorder %s35, 0
      %s38 = sadd.s32 %s37, 1
      %s39 = scalar_select %p36, %s37, %s38
      %p42 = pneg %p36
      %p43 = scmp.eq.s32.totalorder %s27, 1
      %p44 = por %p42, %p43
      %p45 = scmp.ne.s32.totalorder %s37, %s40
      %p46 = scmp.eq.s32.totalorder %s27, 0
      %p47 = por %p45, %p46
      %p48 = scmp.ne.s32.totalorder %s37, %s40
      %p49 = scmp.eq.s32.totalorder %s32, 1
      %p50 = por %p48, %p49
      %p51 = scmp.ne.s32.totalorder %s40, %s41
      %p52 = scmp.eq.s32.totalorder %s32, 0
      %p53 = por %p51, %p52
      %p54 = scmp.ne.s32.totalorder %s40, %s41
      %p55 = scmp.eq.s32.totalorder %s33, 1
      %p56 = por %p54, %p55
      %p58 = scmp.ne.s32.totalorder %s41, %s57
      %p59 = scmp.eq.s32.totalorder %s33, 0
      %p60 = por %p58, %p59
      %s61 = ssub.s32 %s27, %s34
      %p62 = scmp.eq.s32.totalorder %s61, 0
      %s64 = sadd.s32 %s63, 1
      %s65 = scalar_select %p62, %s63, %s64
      %p68 = pneg %p62
      %p69 = scmp.eq.s32.totalorder %s27, 1
      %p70 = por %p68, %p69
      %p71 = scmp.ne.s32.totalorder %s63, %s66
      %p72 = scmp.eq.s32.totalorder %s27, 0
      %p73 = por %p71, %p72
      %p74 = scmp.ne.s32.totalorder %s63, %s66
      %p75 = scmp.eq.s32.totalorder %s32, 1
      %p76 = por %p74, %p75
      %p77 = scmp.ne.s32.totalorder %s66, %s67
      %p78 = scmp.eq.s32.totalorder %s32, 0
      %p79 = por %p77, %p78
      %p80 = scmp.ne.s32.totalorder %s66, %s67
      %p81 = scmp.eq.s32.totalorder %s33, 1
      %p82 = por %p80, %p81
      %p84 = scmp.ne.s32.totalorder %s67, %s83
      %p85 = scmp.eq.s32.totalorder %s33, 0
      %p86 = por %p84, %p85
      %s88 = sadd.s32 %s87, 1
      %p91 = scmp.eq.s32.totalorder %s27, 1
      %p92 = scmp.ne.s32.totalorder %s87, %s89
      %p93 = scmp.eq.s32.totalorder %s27, 0
      %p94 = por %p92, %p93
      %p95 = scmp.ne.s32.totalorder %s87, %s89
      %p96 = scmp.eq.s32.totalorder %s32, 1
      %p97 = por %p95, %p96
      %p98 = scmp.ne.s32.totalorder %s89, %s90
      %p99 = scmp.eq.s32.totalorder %s32, 0
      %p100 = por %p98, %p99
      %p101 = scmp.ne.s32.totalorder %s89, %s90
      %p102 = scmp.eq.s32.totalorder %s33, 1
      %p103 = por %p101, %p102
      %p105 = scmp.ne.s32.totalorder %s90, %s104
      %p106 = scmp.eq.s32.totalorder %s33, 0
      %p107 = por %p105, %p106
      %s109 = sadd.s32 %s108, 1
      %p112 = scmp.eq.s32.totalorder %s27, 1
      %p113 = scmp.ne.s32.totalorder %s108, %s110
      %p114 = scmp.eq.s32.totalorder %s27, 0
      %p115 = por %p113, %p114
      %p116 = scmp.ne.s32.totalorder %s108, %s110
      %p117 = scmp.eq.s32.totalorder %s32, 1
      %p118 = por %p116, %p117
      %p119 = scmp.ne.s32.totalorder %s110, %s111
      %p120 = scmp.eq.s32.totalorder %s32, 0
      %p121 = por %p119, %p120
      %p122 = scmp.ne.s32.totalorder %s110, %s111
      %p123 = scmp.eq.s32.totalorder %s33, 1
      %p124 = por %p122, %p123
      %p126 = scmp.ne.s32.totalorder %s111, %s125
      %p127 = scmp.eq.s32.totalorder %s33, 0
      %p128 = por %p126, %p127
      %s130 = sadd.s32 %s129, 1
      %p133 = scmp.eq.s32.totalorder %s27, 1
      %p134 = scmp.ne.s32.totalorder %s129, %s131
      %p135 = scmp.eq.s32.totalorder %s27, 0
      %p136 = por %p134, %p135
      %p137 = scmp.ne.s32.totalorder %s129, %s131
      %p138 = scmp.eq.s32.totalorder %s32, 1
      %p139 = por %p137, %p138
      %p140 = scmp.ne.s32.totalorder %s131, %s132
      %p141 = scmp.eq.s32.totalorder %s32, 0
      %p142 = por %p140, %p141
      %p143 = scmp.ne.s32.totalorder %s131, %s132
      %p144 = scmp.eq.s32.totalorder %s33, 1
      %p145 = por %p143, %p144
      %p147 = scmp.ne.s32.totalorder %s132, %s146
      %p148 = scmp.eq.s32.totalorder %s33, 0
      %p149 = por %p147, %p148
      %s151 = sadd.s32 %s150, 1
      %p154 = scmp.eq.s32.totalorder %s27, 1
      %p155 = scmp.ne.s32.totalorder %s150, %s152
      %p156 = scmp.eq.s32.totalorder %s27, 0
      %p157 = por %p155, %p156
      %p158 = scmp.ne.s32.totalorder %s150, %s152
      %p159 = scmp.eq.s32.totalorder %s32, 1
      %p160 = por %p158, %p159
      %p161 = scmp.ne.s32.totalorder %s152, %s153
      %p162 = scmp.eq.s32.totalorder %s32, 0
      %p163 = por %p161, %p162
      %p164 = scmp.ne.s32.totalorder %s152, %s153
      %p165 = scmp.eq.s32.totalorder %s33, 1
      %p166 = por %p164, %p165
      %p168 = scmp.ne.s32.totalorder %s153, %s167
      %p169 = scmp.eq.s32.totalorder %s33, 0
      %p170 = por %p168, %p169
      %s171 = ssub.s32 %s27, %s34
      %p172 = scmp.eq.s32.totalorder %s171, 0
      %s174 = sadd.s32 %s173, 1
      %s175 = scalar_select %p172, %s173, %s174
      %p178 = pneg %p172
      %p179 = scmp.eq.s32.totalorder %s27, 1
      %p180 = por %p178, %p179
      %p181 = scmp.ne.s32.totalorder %s173, %s176
      %p182 = scmp.eq.s32.totalorder %s27, 0
      %p183 = por %p181, %p182
      %p184 = scmp.ne.s32.totalorder %s173, %s176
      %p185 = scmp.eq.s32.totalorder %s32, 1
      %p186 = por %p184, %p185
      %p187 = scmp.ne.s32.totalorder %s176, %s177
      %p188 = scmp.eq.s32.totalorder %s32, 0
      %p189 = por %p187, %p188
      %p190 = scmp.ne.s32.totalorder %s176, %s177
      %p191 = scmp.eq.s32.totalorder %s33, 1
      %p192 = por %p190, %p191
      %p194 = scmp.ne.s32.totalorder %s177, %s193
      %p195 = scmp.eq.s32.totalorder %s33, 0
      %p196 = por %p194, %p195
      %s197 = ssub.s32 %s27, %s34
      %p198 = scmp.eq.s32.totalorder %s197, 0
      %s200 = sadd.s32 %s199, 1
      %s201 = scalar_select %p198, %s199, %s200
      %p204 = pneg %p198
      %p205 = scmp.eq.s32.totalorder %s27, 1
      %p206 = por %p204, %p205
      %p207 = scmp.ne.s32.totalorder %s199, %s202
      %p208 = scmp.eq.s32.totalorder %s27, 0
      %p209 = por %p207, %p208
      %p210 = scmp.ne.s32.totalorder %s199, %s202
      %p211 = scmp.eq.s32.totalorder %s32, 1
      %p212 = por %p210, %p211
      %p213 = scmp.ne.s32.totalorder %s202, %s203
      %p214 = scmp.eq.s32.totalorder %s32, 0
      %p215 = por %p213, %p214
      %p216 = scmp.ne.s32.totalorder %s202, %s203
      %p217 = scmp.eq.s32.totalorder %s33, 1
      %p218 = por %p216, %p217
      %p220 = scmp.ne.s32.totalorder %s203, %s219
      %p221 = scmp.eq.s32.totalorder %s33, 0
      %p222 = por %p220, %p221
      %p223 = scmp.le.s32.totalorder 1, %s27
      %p224 = scmp.lt.s32.totalorder %s27, 3
      %p225 = pnand %p223, %p224
      %p226 = pneg %p225
      // Predicated region
      $region9: #{tpu_custom_call.1} parent=5 // pred_check
        _
      $region10: #{tpu_custom_call.1} parent=5 // pred_check_branch
        %228 = sbr.rel (%p225) target = $region12
      $region11: #{tpu_custom_call.1} parent=5 // pred_region
        %s229 = ssub.s32 %s27, 1
        // Predicated region
        $region13: #{tpu_custom_call.1} parent=11 // pred_check
          %p230 = pneg %p100
        $region14: #{tpu_custom_call.1} parent=11 // pred_check_branch
          %232 = sbr.rel (%p230) target = $region16
        $region15: #{tpu_custom_call.1} parent=11 // pred_region
          %s234 = ssub.s32 4096, 4096
          %235 = vsyncadd [#allocation6], %s234
          %s236 = sshll.u32 [#allocation7], 4
          %s237 = int_to_ptr.vmem [resolvable:$true] %s236
          %242 = dma.hbm_to_vmem [thread:$0]  %s2, 4096, %s237, [#allocation6], 128, 128, 8
        $region16: #{tpu_custom_call.1} parent=11 // pred_fallthru
          _
        // Predicated region
        $region17: #{tpu_custom_call.1} parent=11 // pred_check
          %p243 = pneg %p121
        $region18: #{tpu_custom_call.1} parent=11 // pred_check_branch
          %245 = sbr.rel (%p243) target = $region20
        $region19: #{tpu_custom_call.1} parent=11 // pred_region
          _
        $region20: #{tpu_custom_call.1} parent=11 // pred_fallthru
          _
        // Predicated region
        $region21: #{tpu_custom_call.1} parent=11 // pred_check
          %p246 = pneg %p142
        $region22: #{tpu_custom_call.1} parent=11 // pred_check_branch
          %248 = sbr.rel (%p246) target = $region24
        $region23: #{tpu_custom_call.1} parent=11 // pred_region
          %s250 = ssub.s32 4096, 4096
          %251 = vsyncadd [#allocation9], %s250
          %s252 = sshll.u32 [#allocation8], 4
          %s253 = int_to_ptr.vmem [resolvable:$true] %s252
          %258 = dma.hbm_to_vmem [thread:$0]  %s4, 4096, %s253, [#allocation9], 128, 128, 8
        $region24: #{tpu_custom_call.1} parent=11 // pred_fallthru
          _
        // Predicated region
        $region25: #{tpu_custom_call.1} parent=11 // pred_check
          %p259 = pneg %p163
        $region26: #{tpu_custom_call.1} parent=11 // pred_check_branch
          %261 = sbr.rel (%p259) target = $region28
        $region27: #{tpu_custom_call.1} parent=11 // pred_region
          _
        $region28: #{tpu_custom_call.1} parent=11 // pred_fallthru
          _
      $region12: #{tpu_custom_call.1} parent=5 // pred_fallthru
        _
      %p262 = scmp.lt.s32.totalorder %s27, 2
      // Predicated region
      $region29: #{tpu_custom_call.1} parent=5 // pred_check
        %p263 = pneg %p262
      $region30: #{tpu_custom_call.1} parent=5 // pred_check_branch
        %265 = sbr.rel (%p263) target = $region32
      $region31: #{tpu_custom_call.1} parent=5 // pred_region
        // Predicated region
        $region33: #{tpu_custom_call.1} parent=31 // pred_check
          %p266 = pneg %p47
        $region34: #{tpu_custom_call.1} parent=31 // pred_check_branch
          %268 = sbr.rel (%p266) target = $region36
        $region35: #{tpu_custom_call.1} parent=31 // pred_region
          %s269 = sand.u32 %s37, 1
          %s270 = scalar_lea.sflag [#allocation3], %s269
          %s271 = sand.u32 %s37, 1
          %s272 = smul.addr %s271, 256
          %s273 = scalar_lea.vmem [#allocation2], %s272
          %s274 = smul.u32 16, %s27
          %s276 = ssub.s32 4096, 4096
          %277 = vsyncadd %s270, %s276
          %s278 = smul.addr %s274, 2
          %s279 = smul.addr %s278, 128
          %s280 = scalar_lea.hbm %s0, %s279
          %s281 = sshll.u32 %s273, 4
          %s282 = int_to_ptr.vmem [resolvable:$true] %s281
          %287 = dma.hbm_to_vmem [thread:$0]  %s280, 4096, %s282, %s270, 256, 256, 16
        $region36: #{tpu_custom_call.1} parent=31 // pred_fallthru
          _
        // Predicated region
        $region37: #{tpu_custom_call.1} parent=31 // pred_check
          %p288 = pneg %p73
        $region38: #{tpu_custom_call.1} parent=31 // pred_check_branch
          %290 = sbr.rel (%p288) target = $region40
        $region39: #{tpu_custom_call.1} parent=31 // pred_region
          %s291 = sand.u32 %s27, 1
          %s292 = scalar_lea.sflag [#allocation6], %s291
          %s293 = sand.u32 %s63, 1
          %s294 = smul.addr %s293, 256
          %s295 = scalar_lea.vmem [#allocation5], %s294
          %s296 = smul.u32 16, %s27
          %s298 = ssub.s32 4096, 4096
          %299 = vsyncadd %s292, %s298
          %s300 = smul.addr %s296, 2
          %s301 = smul.addr %s300, 128
          %s302 = scalar_lea.hbm %s1, %s301
          %s303 = sshll.u32 %s295, 4
          %s304 = int_to_ptr.vmem [resolvable:$true] %s303
          %309 = dma.hbm_to_vmem [thread:$0]  %s302, 4096, %s304, %s292, 256, 256, 16
        $region40: #{tpu_custom_call.1} parent=31 // pred_fallthru
          _
      $region32: #{tpu_custom_call.1} parent=5 // pred_fallthru
        _
      %p310 = scmp.le.s32.totalorder 1, %s27
      %p311 = scmp.lt.s32.totalorder %s27, 3
      %p312 = pnand %p310, %p311
      %p313 = pneg %p312
      // Predicated region
      $region41: #{tpu_custom_call.1} parent=5 // pred_check
        _
      $region42: #{tpu_custom_call.1} parent=5 // pred_check_branch
        %315 = sbr.rel (%p312) target = $region44
      $region43: #{tpu_custom_call.1} parent=5 // pred_region
        %s316 = ssub.s32 %s27, 1
        %s317 = sand.u32 %s40, 1
        %s318 = scalar_lea.sflag [#allocation3], %s317
        %s319 = sand.u32 %s40, 1
        %s320 = smul.addr %s319, 256
        %s321 = scalar_lea.vmem [#allocation2], %s320
        // Predicated region
        $region45: #{tpu_custom_call.1} parent=43 // pred_check
          %p322 = pneg %p53
        $region46: #{tpu_custom_call.1} parent=43 // pred_check_branch
          %324 = sbr.rel (%p322) target = $region48
        $region47: #{tpu_custom_call.1} parent=43 // pred_region
          %325 = dma.done %s318, 4096
        $region48: #{tpu_custom_call.1} parent=43 // pred_fallthru
          _
        %s326 = sand.u32 %s32, 1
        %s327 = scalar_lea.sflag [#allocation6], %s326
        %s328 = sand.u32 %s66, 1
        %s329 = smul.addr %s328, 256
        %s330 = scalar_lea.vmem [#allocation5], %s329
        // Predicated region
        $region49: #{tpu_custom_call.1} parent=43 // pred_check
          %p331 = pneg %p79
        $region50: #{tpu_custom_call.1} parent=43 // pred_check_branch
          %333 = sbr.rel (%p331) target = $region52
        $region51: #{tpu_custom_call.1} parent=43 // pred_region
          %334 = dma.done %s327, 4096
        $region52: #{tpu_custom_call.1} parent=43 // pred_fallthru
          _
        // Predicated region
        $region53: #{tpu_custom_call.1} parent=43 // pred_check
          %p335 = pneg %p100
        $region54: #{tpu_custom_call.1} parent=43 // pred_check_branch
          %337 = sbr.rel (%p335) target = $region56
        $region55: #{tpu_custom_call.1} parent=43 // pred_region
          %338 = dma.done [#allocation6], 4096
        $region56: #{tpu_custom_call.1} parent=43 // pred_fallthru
          _
        // Predicated region
        $region57: #{tpu_custom_call.1} parent=43 // pred_check
          %p339 = pneg %p142
        $region58: #{tpu_custom_call.1} parent=43 // pred_check_branch
          %341 = sbr.rel (%p339) target = $region60
        $region59: #{tpu_custom_call.1} parent=43 // pred_region
          %342 = dma.done [#allocation9], 4096
        $region60: #{tpu_custom_call.1} parent=43 // pred_fallthru
          _
        %s343 = sand.u32 %s40, 1
        %s344 = scalar_lea.sflag [#allocation3], %s343
        %s345 = sand.u32 %s40, 1
        %s346 = smul.addr %s345, 256
        %s347 = scalar_lea.vmem [#allocation2], %s346
        %p348 = pneg %p53
        %p349 = pneg %p50
        %s350 = sand.u32 %s32, 1
        %s351 = scalar_lea.sflag [#allocation6], %s350
        %s352 = sand.u32 %s66, 1
        %s353 = smul.addr %s352, 256
        %s354 = scalar_lea.vmem [#allocation5], %s353
        %p355 = pneg %p79
        %p356 = pneg %p76
        %p357 = pneg %p100
        %p358 = pneg %p97
        %p359 = pneg %p121
        %p360 = pneg %p118
        %p361 = pneg %p142
        %p362 = pneg %p139
        %p363 = pneg %p163
        %p364 = pneg %p160
        %p365 = pneg %p189
        %p366 = pneg %p186
        %s367 = sand.u32 %s176, 1
        %s368 = scalar_lea.sflag [#allocation4], %s367
        %s369 = sand.u32 %s176, 1
        %s370 = smul.addr %s369, 256
        %s371 = scalar_lea.vmem [#allocation10], %s370
        %p372 = pneg %p215
        %p373 = pneg %p212
        %s374 = sand.u32 %s202, 1
        %s375 = scalar_lea.sflag [#allocation12], %s374
        %s376 = sand.u32 %s202, 1
        %s377 = smul.addr %s376, 256
        %s378 = scalar_lea.vmem [#allocation11], %s377
        %s379 = smul.u32 16, %s32
        %s380 = smul.u32 16, %s32
        %s381 = smul.u32 16, %s32
        %s382 = smul.u32 16, %s32
        %v383 = vld [vmem:[%s321] sm:$0xff]
        %v384 = vld [vmem:[%s321 + $0x8] sm:$0xff]
        %v385 = vld [vmem:[%s321 + $0x10] sm:$0xff]
        %v386 = vld [vmem:[%s321 + $0x18] sm:$0xff]
        %v387 = vld [vmem:[%s321 + $0x20] sm:$0xff]
        %v388 = vld [vmem:[%s321 + $0x28] sm:$0xff]
        %v389 = vld [vmem:[%s321 + $0x30] sm:$0xff]
        %v390 = vld [vmem:[%s321 + $0x38] sm:$0xff]
        %v391 = vld [vmem:[%s321 + $0x40] sm:$0xff]
        %v392 = vld [vmem:[%s321 + $0x48] sm:$0xff]
        %v393 = vld [vmem:[%s321 + $0x50] sm:$0xff]
        %v394 = vld [vmem:[%s321 + $0x58] sm:$0xff]
        %v395 = vld [vmem:[%s321 + $0x60] sm:$0xff]
        %v396 = vld [vmem:[%s321 + $0x68] sm:$0xff]
        %v397 = vld [vmem:[%s321 + $0x70] sm:$0xff]
        %v398 = vld [vmem:[%s321 + $0x78] sm:$0xff]
        %v399 = vld [vmem:[%s321 + $0x80] sm:$0xff]
        %v400 = vld [vmem:[%s321 + $0x88] sm:$0xff]
        %v401 = vld [vmem:[%s321 + $0x90] sm:$0xff]
        %v402 = vld [vmem:[%s321 + $0x98] sm:$0xff]
        %v403 = vld [vmem:[%s321 + $0xa0] sm:$0xff]
        %v404 = vld [vmem:[%s321 + $0xa8] sm:$0xff]
        %v405 = vld [vmem:[%s321 + $0xb0] sm:$0xff]
        %v406 = vld [vmem:[%s321 + $0xb8] sm:$0xff]
        %v407 = vld [vmem:[%s321 + $0xc0] sm:$0xff]
        %v408 = vld [vmem:[%s321 + $0xc8] sm:$0xff]
        %v409 = vld [vmem:[%s321 + $0xd0] sm:$0xff]
        %v410 = vld [vmem:[%s321 + $0xd8] sm:$0xff]
        %v411 = vld [vmem:[%s321 + $0xe0] sm:$0xff]
        %v412 = vld [vmem:[%s321 + $0xe8] sm:$0xff]
        %v413 = vld [vmem:[%s321 + $0xf0] sm:$0xff]
        %v414 = vld [vmem:[%s321 + $0xf8] sm:$0xff]
        %v415 = vpack.c.bf16 %v385, %v383
        %v416 = vpack.c.bf16 %v386, %v384
        %v417 = vpack.c.bf16 %v389, %v387
        %v418 = vpack.c.bf16 %v390, %v388
        %v419 = vpack.c.bf16 %v393, %v391
        %v420 = vpack.c.bf16 %v394, %v392
        %v421 = vpack.c.bf16 %v397, %v395
        %v422 = vpack.c.bf16 %v398, %v396
        %v423 = vpack.c.bf16 %v401, %v399
        %v424 = vpack.c.bf16 %v402, %v400
        %v425 = vpack.c.bf16 %v405, %v403
        %v426 = vpack.c.bf16 %v406, %v404
        %v427 = vpack.c.bf16 %v409, %v407
        %v428 = vpack.c.bf16 %v410, %v408
        %v429 = vpack.c.bf16 %v413, %v411
        %v430 = vpack.c.bf16 %v414, %v412
        %v431 = vld [vmem:[#allocation7] sm:$0xff]
        %v432 = vld [vmem:[#allocation7 + $0x8] sm:$0xff]
        %v433 = vld [vmem:[#allocation7 + $0x10] sm:$0xff]
        %v434 = vld [vmem:[#allocation7 + $0x18] sm:$0xff]
        %v435 = vld [vmem:[#allocation7 + $0x20] sm:$0xff]
        %v436 = vld [vmem:[#allocation7 + $0x28] sm:$0xff]
        %v437 = vld [vmem:[#allocation7 + $0x30] sm:$0xff]
        %v438 = vld [vmem:[#allocation7 + $0x38] sm:$0xff]
        %v439 = vld [vmem:[#allocation7 + $0x40] sm:$0xff]
        %v440 = vld [vmem:[#allocation7 + $0x48] sm:$0xff]
        %v441 = vld [vmem:[#allocation7 + $0x50] sm:$0xff]
        %v442 = vld [vmem:[#allocation7 + $0x58] sm:$0xff]
        %v443 = vld [vmem:[#allocation7 + $0x60] sm:$0xff]
        %v444 = vld [vmem:[#allocation7 + $0x68] sm:$0xff]
        %v445 = vld [vmem:[#allocation7 + $0x70] sm:$0xff]
        %v446 = vld [vmem:[#allocation7 + $0x78] sm:$0xff]
        %v447 = vld [vmem:[#allocation7 + $0x80] sm:$0xff]
        %v448 = vld [vmem:[#allocation7 + $0x88] sm:$0xff]
        %v449 = vld [vmem:[#allocation7 + $0x90] sm:$0xff]
        %v450 = vld [vmem:[#allocation7 + $0x98] sm:$0xff]
        %v451 = vld [vmem:[#allocation7 + $0xa0] sm:$0xff]
        %v452 = vld [vmem:[#allocation7 + $0xa8] sm:$0xff]
        %v453 = vld [vmem:[#allocation7 + $0xb0] sm:$0xff]
        %v454 = vld [vmem:[#allocation7 + $0xb8] sm:$0xff]
        %v455 = vld [vmem:[#allocation7 + $0xc0] sm:$0xff]
        %v456 = vld [vmem:[#allocation7 + $0xc8] sm:$0xff]
        %v457 = vld [vmem:[#allocation7 + $0xd0] sm:$0xff]
        %v458 = vld [vmem:[#allocation7 + $0xd8] sm:$0xff]
        %v459 = vld [vmem:[#allocation7 + $0xe0] sm:$0xff]
        %v460 = vld [vmem:[#allocation7 + $0xe8] sm:$0xff]
        %v461 = vld [vmem:[#allocation7 + $0xf0] sm:$0xff]
        %v462 = vld [vmem:[#allocation7 + $0xf8] sm:$0xff]
        %v463 = vld [vmem:[%s3] sm:$0x3]
        %v465 = vlaneseq
        %v466 = vshrl.u32 %v465, 7
        %v467 = vsub.s32 0, %v466
        %v468 = vrot.slane %v463, %v467
        %v469 = vlaneseq
        %v470 = vshrl.u32 %v469, 7
        %v471 = vsub.s32 1, %v470
        %v472 = vrot.slane %v463, %v471
        %v507 = vunpack.c.l.b16 %v431
        %v508 = vunpack.c.h.b16 %v431
        %v509 = vunpack.c.l.b16 %v432
        %v510 = vunpack.c.h.b16 %v432
        %v511 = vunpack.c.l.b16 %v433
        %v512 = vunpack.c.h.b16 %v433
        %v513 = vunpack.c.l.b16 %v434
        %v514 = vunpack.c.h.b16 %v434
        %v515 = vunpack.c.l.b16 %v435
        %v516 = vunpack.c.h.b16 %v435
        %v517 = vunpack.c.l.b16 %v436
        %v518 = vunpack.c.h.b16 %v436
        %v519 = vunpack.c.l.b16 %v437
        %v520 = vunpack.c.h.b16 %v437
        %v521 = vunpack.c.l.b16 %v438
        %v522 = vunpack.c.h.b16 %v438
        %v523 = vunpack.c.l.b16 %v439
        %v524 = vunpack.c.h.b16 %v439
        %v525 = vunpack.c.l.b16 %v440
        %v526 = vunpack.c.h.b16 %v440
        %v527 = vunpack.c.l.b16 %v441
        %v528 = vunpack.c.h.b16 %v441
        %v529 = vunpack.c.l.b16 %v442
        %v530 = vunpack.c.h.b16 %v442
        %v531 = vunpack.c.l.b16 %v443
        %v532 = vunpack.c.h.b16 %v443
        %v533 = vunpack.c.l.b16 %v444
        %v534 = vunpack.c.h.b16 %v444
        %v535 = vunpack.c.l.b16 %v445
        %v536 = vunpack.c.h.b16 %v445
        %v537 = vunpack.c.l.b16 %v446
        %v538 = vunpack.c.h.b16 %v446
        %v539 = vunpack.c.l.b16 %v447
        %v540 = vunpack.c.h.b16 %v447
        %v541 = vunpack.c.l.b16 %v448
        %v542 = vunpack.c.h.b16 %v448
        %v543 = vunpack.c.l.b16 %v449
        %v544 = vunpack.c.h.b16 %v449
        %v545 = vunpack.c.l.b16 %v450
        %v546 = vunpack.c.h.b16 %v450
        %v547 = vunpack.c.l.b16 %v451
        %v548 = vunpack.c.h.b16 %v451
        %v549 = vunpack.c.l.b16 %v452
        %v550 = vunpack.c.h.b16 %v452
        %v551 = vunpack.c.l.b16 %v453
        %v552 = vunpack.c.h.b16 %v453
        %v553 = vunpack.c.l.b16 %v454
        %v554 = vunpack.c.h.b16 %v454
        %v555 = vunpack.c.l.b16 %v455
        %v556 = vunpack.c.h.b16 %v455
        %v557 = vunpack.c.l.b16 %v456
        %v558 = vunpack.c.h.b16 %v456
        %v559 = vunpack.c.l.b16 %v457
        %v560 = vunpack.c.h.b16 %v457
        %v561 = vunpack.c.l.b16 %v458
        %v562 = vunpack.c.h.b16 %v458
        %v563 = vunpack.c.l.b16 %v459
        %v564 = vunpack.c.h.b16 %v459
        %v565 = vunpack.c.l.b16 %v460
        %v566 = vunpack.c.h.b16 %v460
        %v567 = vunpack.c.l.b16 %v461
        %v568 = vunpack.c.h.b16 %v461
        %v569 = vunpack.c.l.b16 %v462
        %v570 = vunpack.c.h.b16 %v462
        %v571 = vpack.c.b16 %v509, %v507
        %v572 = vpack.c.b16 %v510, %v508
        %v573 = vpack.c.b16 %v513, %v511
        %v574 = vpack.c.b16 %v514, %v512
        %v575 = vpack.c.b16 %v517, %v515
        %v576 = vpack.c.b16 %v518, %v516
        %v577 = vpack.c.b16 %v521, %v519
        %v578 = vpack.c.b16 %v522, %v520
        %v579 = vpack.c.b16 %v525, %v523
        %v580 = vpack.c.b16 %v526, %v524
        %v581 = vpack.c.b16 %v529, %v527
        %v582 = vpack.c.b16 %v530, %v528
        %v583 = vpack.c.b16 %v533, %v531
        %v584 = vpack.c.b16 %v534, %v532
        %v585 = vpack.c.b16 %v537, %v535
        %v586 = vpack.c.b16 %v538, %v536
        %v587 = vpack.c.b16 %v541, %v539
        %v588 = vpack.c.b16 %v542, %v540
        %v589 = vpack.c.b16 %v545, %v543
        %v590 = vpack.c.b16 %v546, %v544
        %v591 = vpack.c.b16 %v549, %v547
        %v592 = vpack.c.b16 %v550, %v548
        %v593 = vpack.c.b16 %v553, %v551
        %v594 = vpack.c.b16 %v554, %v552
        %v595 = vpack.c.b16 %v557, %v555
        %v596 = vpack.c.b16 %v558, %v556
        %v597 = vpack.c.b16 %v561, %v559
        %v598 = vpack.c.b16 %v562, %v560
        %v599 = vpack.c.b16 %v565, %v563
        %v600 = vpack.c.b16 %v566, %v564
        %v601 = vpack.c.b16 %v569, %v567
        %v602 = vpack.c.b16 %v570, %v568
        %635 = vmatprep.subr.bf16.mxu0 %v586
        %636 = vmatpush1.bf16.msra.mxu0 %v585
        %637 = vmatprep.subr.bf16.mxu0 %v584
        %638 = vmatpush1.bf16.msra.mxu0 %v583
        %639 = vmatprep.subr.bf16.mxu0 %v582
        %640 = vmatpush1.bf16.msra.mxu0 %v581
        %641 = vmatprep.subr.bf16.mxu0 %v580
        %642 = vmatpush1.bf16.msra.mxu0 %v579
        %643 = vmatprep.subr.bf16.mxu0 %v578
        %644 = vmatpush1.bf16.msra.mxu0 %v577
        %645 = vmatprep.subr.bf16.mxu0 %v576
        %646 = vmatpush1.bf16.msra.mxu0 %v575
        %647 = vmatprep.subr.bf16.mxu0 %v574
        %648 = vmatpush1.bf16.msra.mxu0 %v573
        %649 = vmatprep.subr.bf16.mxu0 %v572
        %650 = vmatpush1.bf16.msra.mxu0 %v571
        %651 = vmatprep.subr.bf16.mxu0 %v602
        %652 = vmatpush2.bf16.msra.mxu0 %v601
        %653 = vmatprep.subr.bf16.mxu0 %v600
        %654 = vmatpush2.bf16.msra.mxu0 %v599
        %655 = vmatprep.subr.bf16.mxu0 %v598
        %656 = vmatpush2.bf16.msra.mxu0 %v597
        %657 = vmatprep.subr.bf16.mxu0 %v596
        %658 = vmatpush2.bf16.msra.mxu0 %v595
        %659 = vmatprep.subr.bf16.mxu0 %v594
        %660 = vmatpush2.bf16.msra.mxu0 %v593
        %661 = vmatprep.subr.bf16.mxu0 %v592
        %662 = vmatpush2.bf16.msra.mxu0 %v591
        %663 = vmatprep.subr.bf16.mxu0 %v590
        %664 = vmatpush2.bf16.msra.mxu0 %v589
        %665 = vmatprep.subr.bf16.mxu0 %v588
        %666 = vmatpush2.bf16.msra.mxu0 %v587
        %667 = vmatprep.mubr.bf16.mxu0 %v416
        %668 = vmatmul.mubr.bf16.gmra.mxu0 %v415
        %v669 = vpop.f32.mrf.mxu0
        %v670 = vadd.f32 %v468, %v669
        %v671 = vpop.f32.mrf.mxu0
        %v672 = vadd.f32 %v472, %v671
        %v673 = vpop.f32.mrf.mxu0
        %v674 = vadd.f32 %v468, %v673
        %v675 = vpop.f32.mrf.mxu0
        %v676 = vadd.f32 %v472, %v675
        %677 = vmatprep.mubr.bf16.mxu0 %v418
        %678 = vmatmul.mubr.bf16.gmra.mxu0 %v417
        %v679 = vpop.f32.mrf.mxu0
        %v680 = vadd.f32 %v468, %v679
        %v681 = vpop.f32.mrf.mxu0
        %v682 = vadd.f32 %v472, %v681
        %v683 = vpop.f32.mrf.mxu0
        %v684 = vadd.f32 %v468, %v683
        %v685 = vpop.f32.mrf.mxu0
        %v686 = vadd.f32 %v472, %v685
        %687 = vmatprep.mubr.bf16.mxu0 %v420
        %688 = vmatmul.mubr.bf16.gmra.mxu0 %v419
        %v689 = vpop.f32.mrf.mxu0
        %v690 = vadd.f32 %v468, %v689
        %v691 = vpop.f32.mrf.mxu0
        %v692 = vadd.f32 %v472, %v691
        %v693 = vpop.f32.mrf.mxu0
        %v694 = vadd.f32 %v468, %v693
        %v695 = vpop.f32.mrf.mxu0
        %v696 = vadd.f32 %v472, %v695
        %697 = vmatprep.mubr.bf16.mxu0 %v422
        %698 = vmatmul.mubr.bf16.gmra.mxu0 %v421
        %v699 = vpop.f32.mrf.mxu0
        %v700 = vadd.f32 %v468, %v699
        %v701 = vpop.f32.mrf.mxu0
        %v702 = vadd.f32 %v472, %v701
        %v703 = vpop.f32.mrf.mxu0
        %v704 = vadd.f32 %v468, %v703
        %v705 = vpop.f32.mrf.mxu0
        %v706 = vadd.f32 %v472, %v705
        %707 = vmatprep.mubr.bf16.mxu0 %v424
        %708 = vmatmul.mubr.bf16.gmra.mxu0 %v423
        %v709 = vpop.f32.mrf.mxu0
        %v710 = vadd.f32 %v468, %v709
        %v711 = vpop.f32.mrf.mxu0
        %v712 = vadd.f32 %v472, %v711
        %v713 = vpop.f32.mrf.mxu0
        %v714 = vadd.f32 %v468, %v713
        %v715 = vpop.f32.mrf.mxu0
        %v716 = vadd.f32 %v472, %v715
        %717 = vmatprep.mubr.bf16.mxu0 %v426
        %718 = vmatmul.mubr.bf16.gmra.mxu0 %v425
        %v719 = vpop.f32.mrf.mxu0
        %v720 = vadd.f32 %v468, %v719
        %v721 = vpop.f32.mrf.mxu0
        %v722 = vadd.f32 %v472, %v721
        %v723 = vpop.f32.mrf.mxu0
        %v724 = vadd.f32 %v468, %v723
        %v725 = vpop.f32.mrf.mxu0
        %v726 = vadd.f32 %v472, %v725
        %727 = vmatprep.mubr.bf16.mxu0 %v428
        %728 = vmatmul.mubr.bf16.gmra.mxu0 %v427
        %v729 = vpop.f32.mrf.mxu0
        %v730 = vadd.f32 %v468, %v729
        %v731 = vpop.f32.mrf.mxu0
        %v732 = vadd.f32 %v472, %v731
        %v733 = vpop.f32.mrf.mxu0
        %v734 = vadd.f32 %v468, %v733
        %v735 = vpop.f32.mrf.mxu0
        %v736 = vadd.f32 %v472, %v735
        %737 = vmatprep.mubr.bf16.mxu0 %v430
        %738 = vmatmul.mubr.bf16.gmra.mxu0 %v429
        %v739 = vpop.f32.mrf.mxu0
        %v740 = vadd.f32 %v468, %v739
        %v741 = vpop.f32.mrf.mxu0
        %v742 = vadd.f32 %v472, %v741
        %v743 = vpop.f32.mrf.mxu0
        %v744 = vadd.f32 %v468, %v743
        %v745 = vpop.f32.mrf.mxu0
        %v746 = vadd.f32 %v472, %v745
        %747 = vdwg.mxu0
        %v748 = vmax.f32 %v670, 0.0
        %v749 = vmax.f32 %v672, 0.0
        %v750 = vmax.f32 %v674, 0.0
        %v751 = vmax.f32 %v676, 0.0
        %v752 = vmax.f32 %v680, 0.0
        %v753 = vmax.f32 %v682, 0.0
        %v754 = vmax.f32 %v684, 0.0
        %v755 = vmax.f32 %v686, 0.0
        %v756 = vmax.f32 %v690, 0.0
        %v757 = vmax.f32 %v692, 0.0
        %v758 = vmax.f32 %v694, 0.0
        %v759 = vmax.f32 %v696, 0.0
        %v760 = vmax.f32 %v700, 0.0
        %v761 = vmax.f32 %v702, 0.0
        %v762 = vmax.f32 %v704, 0.0
        %v763 = vmax.f32 %v706, 0.0
        %v764 = vmax.f32 %v710, 0.0
        %v765 = vmax.f32 %v712, 0.0
        %v766 = vmax.f32 %v714, 0.0
        %v767 = vmax.f32 %v716, 0.0
        %v768 = vmax.f32 %v720, 0.0
        %v769 = vmax.f32 %v722, 0.0
        %v770 = vmax.f32 %v724, 0.0
        %v771 = vmax.f32 %v726, 0.0
        %v772 = vmax.f32 %v730, 0.0
        %v773 = vmax.f32 %v732, 0.0
        %v774 = vmax.f32 %v734, 0.0
        %v775 = vmax.f32 %v736, 0.0
        %v776 = vmax.f32 %v740, 0.0
        %v777 = vmax.f32 %v742, 0.0
        %v778 = vmax.f32 %v744, 0.0
        %v779 = vmax.f32 %v746, 0.0
        %v780 = vpack.c.bf16 %v750, %v748
        %v781 = vpack.c.bf16 %v751, %v749
        %v782 = vpack.c.bf16 %v754, %v752
        %v783 = vpack.c.bf16 %v755, %v753
        %v784 = vpack.c.bf16 %v758, %v756
        %v785 = vpack.c.bf16 %v759, %v757
        %v786 = vpack.c.bf16 %v762, %v760
        %v787 = vpack.c.bf16 %v763, %v761
        %v788 = vpack.c.bf16 %v766, %v764
        %v789 = vpack.c.bf16 %v767, %v765
        %v790 = vpack.c.bf16 %v770, %v768
        %v791 = vpack.c.bf16 %v771, %v769
        %v792 = vpack.c.bf16 %v774, %v772
        %v793 = vpack.c.bf16 %v775, %v773
        %v794 = vpack.c.bf16 %v778, %v776
        %v795 = vpack.c.bf16 %v779, %v777
        %v796 = vld [vmem:[#allocation8] sm:$0xff]
        %v797 = vld [vmem:[#allocation8 + $0x8] sm:$0xff]
        %v798 = vld [vmem:[#allocation8 + $0x10] sm:$0xff]
        %v799 = vld [vmem:[#allocation8 + $0x18] sm:$0xff]
        %v800 = vld [vmem:[#allocation8 + $0x20] sm:$0xff]
        %v801 = vld [vmem:[#allocation8 + $0x28] sm:$0xff]
        %v802 = vld [vmem:[#allocation8 + $0x30] sm:$0xff]
        %v803 = vld [vmem:[#allocation8 + $0x38] sm:$0xff]
        %v804 = vld [vmem:[#allocation8 + $0x40] sm:$0xff]
        %v805 = vld [vmem:[#allocation8 + $0x48] sm:$0xff]
        %v806 = vld [vmem:[#allocation8 + $0x50] sm:$0xff]
        %v807 = vld [vmem:[#allocation8 + $0x58] sm:$0xff]
        %v808 = vld [vmem:[#allocation8 + $0x60] sm:$0xff]
        %v809 = vld [vmem:[#allocation8 + $0x68] sm:$0xff]
        %v810 = vld [vmem:[#allocation8 + $0x70] sm:$0xff]
        %v811 = vld [vmem:[#allocation8 + $0x78] sm:$0xff]
        %v812 = vld [vmem:[#allocation8 + $0x80] sm:$0xff]
        %v813 = vld [vmem:[#allocation8 + $0x88] sm:$0xff]
        %v814 = vld [vmem:[#allocation8 + $0x90] sm:$0xff]
        %v815 = vld [vmem:[#allocation8 + $0x98] sm:$0xff]
        %v816 = vld [vmem:[#allocation8 + $0xa0] sm:$0xff]
        %v817 = vld [vmem:[#allocation8 + $0xa8] sm:$0xff]
        %v818 = vld [vmem:[#allocation8 + $0xb0] sm:$0xff]
        %v819 = vld [vmem:[#allocation8 + $0xb8] sm:$0xff]
        %v820 = vld [vmem:[#allocation8 + $0xc0] sm:$0xff]
        %v821 = vld [vmem:[#allocation8 + $0xc8] sm:$0xff]
        %v822 = vld [vmem:[#allocation8 + $0xd0] sm:$0xff]
        %v823 = vld [vmem:[#allocation8 + $0xd8] sm:$0xff]
        %v824 = vld [vmem:[#allocation8 + $0xe0] sm:$0xff]
        %v825 = vld [vmem:[#allocation8 + $0xe8] sm:$0xff]
        %v826 = vld [vmem:[#allocation8 + $0xf0] sm:$0xff]
        %v827 = vld [vmem:[#allocation8 + $0xf8] sm:$0xff]
        %v828 = vld [vmem:[%s5] sm:$0x3]
        %v830 = vlaneseq
        %v831 = vshrl.u32 %v830, 7
        %v832 = vsub.s32 0, %v831
        %v833 = vrot.slane %v828, %v832
        %v834 = vlaneseq
        %v835 = vshrl.u32 %v834, 7
        %v836 = vsub.s32 1, %v835
        %v837 = vrot.slane %v828, %v836
        %v872 = vunpack.c.l.b16 %v796
        %v873 = vunpack.c.h.b16 %v796
        %v874 = vunpack.c.l.b16 %v797
        %v875 = vunpack.c.h.b16 %v797
        %v876 = vunpack.c.l.b16 %v798
        %v877 = vunpack.c.h.b16 %v798
        %v878 = vunpack.c.l.b16 %v799
        %v879 = vunpack.c.h.b16 %v799
        %v880 = vunpack.c.l.b16 %v800
        %v881 = vunpack.c.h.b16 %v800
        %v882 = vunpack.c.l.b16 %v801
        %v883 = vunpack.c.h.b16 %v801
        %v884 = vunpack.c.l.b16 %v802
        %v885 = vunpack.c.h.b16 %v802
        %v886 = vunpack.c.l.b16 %v803
        %v887 = vunpack.c.h.b16 %v803
        %v888 = vunpack.c.l.b16 %v804
        %v889 = vunpack.c.h.b16 %v804
        %v890 = vunpack.c.l.b16 %v805
        %v891 = vunpack.c.h.b16 %v805
        %v892 = vunpack.c.l.b16 %v806
        %v893 = vunpack.c.h.b16 %v806
        %v894 = vunpack.c.l.b16 %v807
        %v895 = vunpack.c.h.b16 %v807
        %v896 = vunpack.c.l.b16 %v808
        %v897 = vunpack.c.h.b16 %v808
        %v898 = vunpack.c.l.b16 %v809
        %v899 = vunpack.c.h.b16 %v809
        %v900 = vunpack.c.l.b16 %v810
        %v901 = vunpack.c.h.b16 %v810
        %v902 = vunpack.c.l.b16 %v811
        %v903 = vunpack.c.h.b16 %v811
        %v904 = vunpack.c.l.b16 %v812
        %v905 = vunpack.c.h.b16 %v812
        %v906 = vunpack.c.l.b16 %v813
        %v907 = vunpack.c.h.b16 %v813
        %v908 = vunpack.c.l.b16 %v814
        %v909 = vunpack.c.h.b16 %v814
        %v910 = vunpack.c.l.b16 %v815
        %v911 = vunpack.c.h.b16 %v815
        %v912 = vunpack.c.l.b16 %v816
        %v913 = vunpack.c.h.b16 %v816
        %v914 = vunpack.c.l.b16 %v817
        %v915 = vunpack.c.h.b16 %v817
        %v916 = vunpack.c.l.b16 %v818
        %v917 = vunpack.c.h.b16 %v818
        %v918 = vunpack.c.l.b16 %v819
        %v919 = vunpack.c.h.b16 %v819
        %v920 = vunpack.c.l.b16 %v820
        %v921 = vunpack.c.h.b16 %v820
        %v922 = vunpack.c.l.b16 %v821
        %v923 = vunpack.c.h.b16 %v821
        %v924 = vunpack.c.l.b16 %v822
        %v925 = vunpack.c.h.b16 %v822
        %v926 = vunpack.c.l.b16 %v823
        %v927 = vunpack.c.h.b16 %v823
        %v928 = vunpack.c.l.b16 %v824
        %v929 = vunpack.c.h.b16 %v824
        %v930 = vunpack.c.l.b16 %v825
        %v931 = vunpack.c.h.b16 %v825
        %v932 = vunpack.c.l.b16 %v826
        %v933 = vunpack.c.h.b16 %v826
        %v934 = vunpack.c.l.b16 %v827
        %v935 = vunpack.c.h.b16 %v827
        %v936 = vpack.c.b16 %v874, %v872
        %v937 = vpack.c.b16 %v875, %v873
        %v938 = vpack.c.b16 %v878, %v876
        %v939 = vpack.c.b16 %v879, %v877
        %v940 = vpack.c.b16 %v882, %v880
        %v941 = vpack.c.b16 %v883, %v881
        %v942 = vpack.c.b16 %v886, %v884
        %v943 = vpack.c.b16 %v887, %v885
        %v944 = vpack.c.b16 %v890, %v888
        %v945 = vpack.c.b16 %v891, %v889
        %v946 = vpack.c.b16 %v894, %v892
        %v947 = vpack.c.b16 %v895, %v893
        %v948 = vpack.c.b16 %v898, %v896
        %v949 = vpack.c.b16 %v899, %v897
        %v950 = vpack.c.b16 %v902, %v900
        %v951 = vpack.c.b16 %v903, %v901
        %v952 = vpack.c.b16 %v906, %v904
        %v953 = vpack.c.b16 %v907, %v905
        %v954 = vpack.c.b16 %v910, %v908
        %v955 = vpack.c.b16 %v911, %v909
        %v956 = vpack.c.b16 %v914, %v912
        %v957 = vpack.c.b16 %v915, %v913
        %v958 = vpack.c.b16 %v918, %v916
        %v959 = vpack.c.b16 %v919, %v917
        %v960 = vpack.c.b16 %v922, %v920
        %v961 = vpack.c.b16 %v923, %v921
        %v962 = vpack.c.b16 %v926, %v924
        %v963 = vpack.c.b16 %v927, %v925
        %v964 = vpack.c.b16 %v930, %v928
        %v965 = vpack.c.b16 %v931, %v929
        %v966 = vpack.c.b16 %v934, %v932
        %v967 = vpack.c.b16 %v935, %v933
        %1000 = vmatprep.subr.bf16.mxu0 %v951
        %1001 = vmatpush1.bf16.msra.mxu0 %v950
        %1002 = vmatprep.subr.bf16.mxu0 %v949
        %1003 = vmatpush1.bf16.msra.mxu0 %v948
        %1004 = vmatprep.subr.bf16.mxu0 %v947
        %1005 = vmatpush1.bf16.msra.mxu0 %v946
        %1006 = vmatprep.subr.bf16.mxu0 %v945
        %1007 = vmatpush1.bf16.msra.mxu0 %v944
        %1008 = vmatprep.subr.bf16.mxu0 %v943
        %1009 = vmatpush1.bf16.msra.mxu0 %v942
        %1010 = vmatprep.subr.bf16.mxu0 %v941
        %1011 = vmatpush1.bf16.msra.mxu0 %v940
        %1012 = vmatprep.subr.bf16.mxu0 %v939
        %1013 = vmatpush1.bf16.msra.mxu0 %v938
        %1014 = vmatprep.subr.bf16.mxu0 %v937
        %1015 = vmatpush1.bf16.msra.mxu0 %v936
        %1016 = vmatprep.subr.bf16.mxu0 %v967
        %1017 = vmatpush2.bf16.msra.mxu0 %v966
        %1018 = vmatprep.subr.bf16.mxu0 %v965
        %1019 = vmatpush2.bf16.msra.mxu0 %v964
        %1020 = vmatprep.subr.bf16.mxu0 %v963
        %1021 = vmatpush2.bf16.msra.mxu0 %v962
        %1022 = vmatprep.subr.bf16.mxu0 %v961
        %1023 = vmatpush2.bf16.msra.mxu0 %v960
        %1024 = vmatprep.subr.bf16.mxu0 %v959
        %1025 = vmatpush2.bf16.msra.mxu0 %v958
        %1026 = vmatprep.subr.bf16.mxu0 %v957
        %1027 = vmatpush2.bf16.msra.mxu0 %v956
        %1028 = vmatprep.subr.bf16.mxu0 %v955
        %1029 = vmatpush2.bf16.msra.mxu0 %v954
        %1030 = vmatprep.subr.bf16.mxu0 %v953
        %1031 = vmatpush2.bf16.msra.mxu0 %v952
        %1032 = vmatprep.mubr.bf16.mxu0 %v781
        %1033 = vmatmul.mubr.bf16.gmra.mxu0 %v780
        %v1034 = vpop.f32.mrf.mxu0
        %v1035 = vadd.f32 %v833, %v1034
        %v1036 = vpop.f32.mrf.mxu0
        %v1037 = vadd.f32 %v837, %v1036
        %v1038 = vpop.f32.mrf.mxu0
        %v1039 = vadd.f32 %v833, %v1038
        %v1040 = vpop.f32.mrf.mxu0
        %v1041 = vadd.f32 %v837, %v1040
        %1042 = vmatprep.mubr.bf16.mxu0 %v783
        %1043 = vmatmul.mubr.bf16.gmra.mxu0 %v782
        %v1044 = vpop.f32.mrf.mxu0
        %v1045 = vadd.f32 %v833, %v1044
        %v1046 = vpop.f32.mrf.mxu0
        %v1047 = vadd.f32 %v837, %v1046
        %v1048 = vpop.f32.mrf.mxu0
        %v1049 = vadd.f32 %v833, %v1048
        %v1050 = vpop.f32.mrf.mxu0
        %v1051 = vadd.f32 %v837, %v1050
        %1052 = vmatprep.mubr.bf16.mxu0 %v785
        %1053 = vmatmul.mubr.bf16.gmra.mxu0 %v784
        %v1054 = vpop.f32.mrf.mxu0
        %v1055 = vadd.f32 %v833, %v1054
        %v1056 = vpop.f32.mrf.mxu0
        %v1057 = vadd.f32 %v837, %v1056
        %v1058 = vpop.f32.mrf.mxu0
        %v1059 = vadd.f32 %v833, %v1058
        %v1060 = vpop.f32.mrf.mxu0
        %v1061 = vadd.f32 %v837, %v1060
        %1062 = vmatprep.mubr.bf16.mxu0 %v787
        %1063 = vmatmul.mubr.bf16.gmra.mxu0 %v786
        %v1064 = vpop.f32.mrf.mxu0
        %v1065 = vadd.f32 %v833, %v1064
        %v1066 = vpop.f32.mrf.mxu0
        %v1067 = vadd.f32 %v837, %v1066
        %v1068 = vpop.f32.mrf.mxu0
        %v1069 = vadd.f32 %v833, %v1068
        %v1070 = vpop.f32.mrf.mxu0
        %v1071 = vadd.f32 %v837, %v1070
        %1072 = vmatprep.mubr.bf16.mxu0 %v789
        %1073 = vmatmul.mubr.bf16.gmra.mxu0 %v788
        %v1074 = vpop.f32.mrf.mxu0
        %v1075 = vadd.f32 %v833, %v1074
        %v1076 = vpop.f32.mrf.mxu0
        %v1077 = vadd.f32 %v837, %v1076
        %v1078 = vpop.f32.mrf.mxu0
        %v1079 = vadd.f32 %v833, %v1078
        %v1080 = vpop.f32.mrf.mxu0
        %v1081 = vadd.f32 %v837, %v1080
        %1082 = vmatprep.mubr.bf16.mxu0 %v791
        %1083 = vmatmul.mubr.bf16.gmra.mxu0 %v790
        %v1084 = vpop.f32.mrf.mxu0
        %v1085 = vadd.f32 %v833, %v1084
        %v1086 = vpop.f32.mrf.mxu0
        %v1087 = vadd.f32 %v837, %v1086
        %v1088 = vpop.f32.mrf.mxu0
        %v1089 = vadd.f32 %v833, %v1088
        %v1090 = vpop.f32.mrf.mxu0
        %v1091 = vadd.f32 %v837, %v1090
        %1092 = vmatprep.mubr.bf16.mxu0 %v793
        %1093 = vmatmul.mubr.bf16.gmra.mxu0 %v792
        %v1094 = vpop.f32.mrf.mxu0
        %v1095 = vadd.f32 %v833, %v1094
        %v1096 = vpop.f32.mrf.mxu0
        %v1097 = vadd.f32 %v837, %v1096
        %v1098 = vpop.f32.mrf.mxu0
        %v1099 = vadd.f32 %v833, %v1098
        %v1100 = vpop.f32.mrf.mxu0
        %v1101 = vadd.f32 %v837, %v1100
        %1102 = vmatprep.mubr.bf16.mxu0 %v795
        %1103 = vmatmul.mubr.bf16.gmra.mxu0 %v794
        %v1104 = vpop.f32.mrf.mxu0
        %v1105 = vadd.f32 %v833, %v1104
        %v1106 = vpop.f32.mrf.mxu0
        %v1107 = vadd.f32 %v837, %v1106
        %v1108 = vpop.f32.mrf.mxu0
        %v1109 = vadd.f32 %v833, %v1108
        %v1110 = vpop.f32.mrf.mxu0
        %v1111 = vadd.f32 %v837, %v1110
        %1112 = vdwg.mxu0
        %v1113 = vld [vmem:[%s330] sm:$0xff]
        %v1114 = vld [vmem:[%s330 + $0x8] sm:$0xff]
        %v1115 = vld [vmem:[%s330 + $0x10] sm:$0xff]
        %v1116 = vld [vmem:[%s330 + $0x18] sm:$0xff]
        %v1117 = vld [vmem:[%s330 + $0x20] sm:$0xff]
        %v1118 = vld [vmem:[%s330 + $0x28] sm:$0xff]
        %v1119 = vld [vmem:[%s330 + $0x30] sm:$0xff]
        %v1120 = vld [vmem:[%s330 + $0x38] sm:$0xff]
        %v1121 = vld [vmem:[%s330 + $0x40] sm:$0xff]
        %v1122 = vld [vmem:[%s330 + $0x48] sm:$0xff]
        %v1123 = vld [vmem:[%s330 + $0x50] sm:$0xff]
        %v1124 = vld [vmem:[%s330 + $0x58] sm:$0xff]
        %v1125 = vld [vmem:[%s330 + $0x60] sm:$0xff]
        %v1126 = vld [vmem:[%s330 + $0x68] sm:$0xff]
        %v1127 = vld [vmem:[%s330 + $0x70] sm:$0xff]
        %v1128 = vld [vmem:[%s330 + $0x78] sm:$0xff]
        %v1129 = vld [vmem:[%s330 + $0x80] sm:$0xff]
        %v1130 = vld [vmem:[%s330 + $0x88] sm:$0xff]
        %v1131 = vld [vmem:[%s330 + $0x90] sm:$0xff]
        %v1132 = vld [vmem:[%s330 + $0x98] sm:$0xff]
        %v1133 = vld [vmem:[%s330 + $0xa0] sm:$0xff]
        %v1134 = vld [vmem:[%s330 + $0xa8] sm:$0xff]
        %v1135 = vld [vmem:[%s330 + $0xb0] sm:$0xff]
        %v1136 = vld [vmem:[%s330 + $0xb8] sm:$0xff]
        %v1137 = vld [vmem:[%s330 + $0xc0] sm:$0xff]
        %v1138 = vld [vmem:[%s330 + $0xc8] sm:$0xff]
        %v1139 = vld [vmem:[%s330 + $0xd0] sm:$0xff]
        %v1140 = vld [vmem:[%s330 + $0xd8] sm:$0xff]
        %v1141 = vld [vmem:[%s330 + $0xe0] sm:$0xff]
        %v1142 = vld [vmem:[%s330 + $0xe8] sm:$0xff]
        %v1143 = vld [vmem:[%s330 + $0xf0] sm:$0xff]
        %v1144 = vld [vmem:[%s330 + $0xf8] sm:$0xff]
        %vm1145 = vcmp.ne.f32.partialorder %v1113, 0.0
        %vm1146 = vcmp.ne.f32.partialorder %v1114, 0.0
        %vm1147 = vcmp.ne.f32.partialorder %v1115, 0.0
        %vm1148 = vcmp.ne.f32.partialorder %v1116, 0.0
        %vm1149 = vcmp.ne.f32.partialorder %v1117, 0.0
        %vm1150 = vcmp.ne.f32.partialorder %v1118, 0.0
        %vm1151 = vcmp.ne.f32.partialorder %v1119, 0.0
        %vm1152 = vcmp.ne.f32.partialorder %v1120, 0.0
        %vm1153 = vcmp.ne.f32.partialorder %v1121, 0.0
        %vm1154 = vcmp.ne.f32.partialorder %v1122, 0.0
        %vm1155 = vcmp.ne.f32.partialorder %v1123, 0.0
        %vm1156 = vcmp.ne.f32.partialorder %v1124, 0.0
        %vm1157 = vcmp.ne.f32.partialorder %v1125, 0.0
        %vm1158 = vcmp.ne.f32.partialorder %v1126, 0.0
        %vm1159 = vcmp.ne.f32.partialorder %v1127, 0.0
        %vm1160 = vcmp.ne.f32.partialorder %v1128, 0.0
        %vm1161 = vcmp.ne.f32.partialorder %v1129, 0.0
        %vm1162 = vcmp.ne.f32.partialorder %v1130, 0.0
        %vm1163 = vcmp.ne.f32.partialorder %v1131, 0.0
        %vm1164 = vcmp.ne.f32.partialorder %v1132, 0.0
        %vm1165 = vcmp.ne.f32.partialorder %v1133, 0.0
        %vm1166 = vcmp.ne.f32.partialorder %v1134, 0.0
        %vm1167 = vcmp.ne.f32.partialorder %v1135, 0.0
        %vm1168 = vcmp.ne.f32.partialorder %v1136, 0.0
        %vm1169 = vcmp.ne.f32.partialorder %v1137, 0.0
        %vm1170 = vcmp.ne.f32.partialorder %v1138, 0.0
        %vm1171 = vcmp.ne.f32.partialorder %v1139, 0.0
        %vm1172 = vcmp.ne.f32.partialorder %v1140, 0.0
        %vm1173 = vcmp.ne.f32.partialorder %v1141, 0.0
        %vm1174 = vcmp.ne.f32.partialorder %v1142, 0.0
        %vm1175 = vcmp.ne.f32.partialorder %v1143, 0.0
        %vm1176 = vcmp.ne.f32.partialorder %v1144, 0.0
        %v1177 = vsel %vm1145, %v1035, -1000.0
        %v1178 = vsel %vm1146, %v1037, -1000.0
        %v1179 = vsel %vm1147, %v1039, -1000.0
        %v1180 = vsel %vm1148, %v1041, -1000.0
        %v1181 = vsel %vm1149, %v1045, -1000.0
        %v1182 = vsel %vm1150, %v1047, -1000.0
        %v1183 = vsel %vm1151, %v1049, -1000.0
        %v1184 = vsel %vm1152, %v1051, -1000.0
        %v1185 = vsel %vm1153, %v1055, -1000.0
        %v1186 = vsel %vm1154, %v1057, -1000.0
        %v1187 = vsel %vm1155, %v1059, -1000.0
        %v1188 = vsel %vm1156, %v1061, -1000.0
        %v1189 = vsel %vm1157, %v1065, -1000.0
        %v1190 = vsel %vm1158, %v1067, -1000.0
        %v1191 = vsel %vm1159, %v1069, -1000.0
        %v1192 = vsel %vm1160, %v1071, -1000.0
        %v1193 = vsel %vm1161, %v1075, -1000.0
        %v1194 = vsel %vm1162, %v1077, -1000.0
        %v1195 = vsel %vm1163, %v1079, -1000.0
        %v1196 = vsel %vm1164, %v1081, -1000.0
        %v1197 = vsel %vm1165, %v1085, -1000.0
        %v1198 = vsel %vm1166, %v1087, -1000.0
        %v1199 = vsel %vm1167, %v1089, -1000.0
        %v1200 = vsel %vm1168, %v1091, -1000.0
        %v1201 = vsel %vm1169, %v1095, -1000.0
        %v1202 = vsel %vm1170, %v1097, -1000.0
        %v1203 = vsel %vm1171, %v1099, -1000.0
        %v1204 = vsel %vm1172, %v1101, -1000.0
        %v1205 = vsel %vm1173, %v1105, -1000.0
        %v1206 = vsel %vm1174, %v1107, -1000.0
        %v1207 = vsel %vm1175, %v1109, -1000.0
        %v1208 = vsel %vm1176, %v1111, -1000.0
        %1209 = vst [vmem:[%s371] sm:$0xff] %v1177
        %1210 = vst [vmem:[%s371 + $0x8] sm:$0xff] %v1178
        %1211 = vst [vmem:[%s371 + $0x10] sm:$0xff] %v1179
        %1212 = vst [vmem:[%s371 + $0x18] sm:$0xff] %v1180
        %1213 = vst [vmem:[%s371 + $0x20] sm:$0xff] %v1181
        %1214 = vst [vmem:[%s371 + $0x28] sm:$0xff] %v1182
        %1215 = vst [vmem:[%s371 + $0x30] sm:$0xff] %v1183
        %1216 = vst [vmem:[%s371 + $0x38] sm:$0xff] %v1184
        %1217 = vst [vmem:[%s371 + $0x40] sm:$0xff] %v1185
        %1218 = vst [vmem:[%s371 + $0x48] sm:$0xff] %v1186
        %1219 = vst [vmem:[%s371 + $0x50] sm:$0xff] %v1187
        %1220 = vst [vmem:[%s371 + $0x58] sm:$0xff] %v1188
        %1221 = vst [vmem:[%s371 + $0x60] sm:$0xff] %v1189
        %1222 = vst [vmem:[%s371 + $0x68] sm:$0xff] %v1190
        %1223 = vst [vmem:[%s371 + $0x70] sm:$0xff] %v1191
        %1224 = vst [vmem:[%s371 + $0x78] sm:$0xff] %v1192
        %1225 = vst [vmem:[%s371 + $0x80] sm:$0xff] %v1193
        %1226 = vst [vmem:[%s371 + $0x88] sm:$0xff] %v1194
        %1227 = vst [vmem:[%s371 + $0x90] sm:$0xff] %v1195
        %1228 = vst [vmem:[%s371 + $0x98] sm:$0xff] %v1196
        %1229 = vst [vmem:[%s371 + $0xa0] sm:$0xff] %v1197
        %1230 = vst [vmem:[%s371 + $0xa8] sm:$0xff] %v1198
        %1231 = vst [vmem:[%s371 + $0xb0] sm:$0xff] %v1199
        %1232 = vst [vmem:[%s371 + $0xb8] sm:$0xff] %v1200
        %1233 = vst [vmem:[%s371 + $0xc0] sm:$0xff] %v1201
        %1234 = vst [vmem:[%s371 + $0xc8] sm:$0xff] %v1202
        %1235 = vst [vmem:[%s371 + $0xd0] sm:$0xff] %v1203
        %1236 = vst [vmem:[%s371 + $0xd8] sm:$0xff] %v1204
        %1237 = vst [vmem:[%s371 + $0xe0] sm:$0xff] %v1205
        %1238 = vst [vmem:[%s371 + $0xe8] sm:$0xff] %v1206
        %1239 = vst [vmem:[%s371 + $0xf0] sm:$0xff] %v1207
        %1240 = vst [vmem:[%s371 + $0xf8] sm:$0xff] %v1208
        %v1241 = vmax.f32 %v1177, %v1178
        %1242 = vmax.xlane.f32.xlu0 %v1241
        %v1243 = vpop.xlane.xlu0 %1242
        %v1244 = vmax.f32 %v1179, %v1180
        %1245 = vmax.xlane.f32.xlu0 %v1244
        %v1246 = vpop.xlane.xlu0 %1245
        %v1247 = vmax.f32 %v1181, %v1182
        %1248 = vmax.xlane.f32.xlu0 %v1247
        %v1249 = vpop.xlane.xlu0 %1248
        %v1250 = vmax.f32 %v1183, %v1184
        %1251 = vmax.xlane.f32.xlu0 %v1250
        %v1252 = vpop.xlane.xlu0 %1251
        %v1253 = vmax.f32 %v1185, %v1186
        %1254 = vmax.xlane.f32.xlu0 %v1253
        %v1255 = vpop.xlane.xlu0 %1254
        %v1256 = vmax.f32 %v1187, %v1188
        %1257 = vmax.xlane.f32.xlu0 %v1256
        %v1258 = vpop.xlane.xlu0 %1257
        %v1259 = vmax.f32 %v1189, %v1190
        %1260 = vmax.xlane.f32.xlu0 %v1259
        %v1261 = vpop.xlane.xlu0 %1260
        %v1262 = vmax.f32 %v1191, %v1192
        %1263 = vmax.xlane.f32.xlu0 %v1262
        %v1264 = vpop.xlane.xlu0 %1263
        %v1265 = vmax.f32 %v1193, %v1194
        %1266 = vmax.xlane.f32.xlu0 %v1265
        %v1267 = vpop.xlane.xlu0 %1266
        %v1268 = vmax.f32 %v1195, %v1196
        %1269 = vmax.xlane.f32.xlu0 %v1268
        %v1270 = vpop.xlane.xlu0 %1269
        %v1271 = vmax.f32 %v1197, %v1198
        %1272 = vmax.xlane.f32.xlu0 %v1271
        %v1273 = vpop.xlane.xlu0 %1272
        %v1274 = vmax.f32 %v1199, %v1200
        %1275 = vmax.xlane.f32.xlu0 %v1274
        %v1276 = vpop.xlane.xlu0 %1275
        %v1277 = vmax.f32 %v1201, %v1202
        %1278 = vmax.xlane.f32.xlu0 %v1277
        %v1279 = vpop.xlane.xlu0 %1278
        %v1280 = vmax.f32 %v1203, %v1204
        %1281 = vmax.xlane.f32.xlu0 %v1280
        %v1282 = vpop.xlane.xlu0 %1281
        %v1283 = vmax.f32 %v1205, %v1206
        %1284 = vmax.xlane.f32.xlu0 %v1283
        %v1285 = vpop.xlane.xlu0 %1284
        %v1286 = vmax.f32 %v1207, %v1208
        %1287 = vmax.xlane.f32.xlu0 %v1286
        %v1288 = vpop.xlane.xlu0 %1287
        %v1289 = vsub.f32 %v1177, %v1243
        %v1290 = vsub.f32 %v1178, %v1243
        %v1291 = vsub.f32 %v1179, %v1246
        %v1292 = vsub.f32 %v1180, %v1246
        %v1293 = vsub.f32 %v1181, %v1249
        %v1294 = vsub.f32 %v1182, %v1249
        %v1295 = vsub.f32 %v1183, %v1252
        %v1296 = vsub.f32 %v1184, %v1252
        %v1297 = vsub.f32 %v1185, %v1255
        %v1298 = vsub.f32 %v1186, %v1255
        %v1299 = vsub.f32 %v1187, %v1258
        %v1300 = vsub.f32 %v1188, %v1258
        %v1301 = vsub.f32 %v1189, %v1261
        %v1302 = vsub.f32 %v1190, %v1261
        %v1303 = vsub.f32 %v1191, %v1264
        %v1304 = vsub.f32 %v1192, %v1264
        %v1305 = vsub.f32 %v1193, %v1267
        %v1306 = vsub.f32 %v1194, %v1267
        %v1307 = vsub.f32 %v1195, %v1270
        %v1308 = vsub.f32 %v1196, %v1270
        %v1309 = vsub.f32 %v1197, %v1273
        %v1310 = vsub.f32 %v1198, %v1273
        %v1311 = vsub.f32 %v1199, %v1276
        %v1312 = vsub.f32 %v1200, %v1276
        %v1313 = vsub.f32 %v1201, %v1279
        %v1314 = vsub.f32 %v1202, %v1279
        %v1315 = vsub.f32 %v1203, %v1282
        %v1316 = vsub.f32 %v1204, %v1282
        %v1317 = vsub.f32 %v1205, %v1285
        %v1318 = vsub.f32 %v1206, %v1285
        %v1319 = vsub.f32 %v1207, %v1288
        %v1320 = vsub.f32 %v1208, %v1288
        %v1321 = vmul.f32 %v1289, 1.442695
        %v1322 = vpow.pop %v1321
        %v1323 = vmul.f32 %v1290, 1.442695
        %v1324 = vpow.pop %v1323
        %v1325 = vmul.f32 %v1291, 1.442695
        %v1326 = vpow.pop %v1325
        %v1327 = vmul.f32 %v1292, 1.442695
        %v1328 = vpow.pop %v1327
        %v1329 = vmul.f32 %v1293, 1.442695
        %v1330 = vpow.pop %v1329
        %v1331 = vmul.f32 %v1294, 1.442695
        %v1332 = vpow.pop %v1331
        %v1333 = vmul.f32 %v1295, 1.442695
        %v1334 = vpow.pop %v1333
        %v1335 = vmul.f32 %v1296, 1.442695
        %v1336 = vpow.pop %v1335
        %v1337 = vmul.f32 %v1297, 1.442695
        %v1338 = vpow.pop %v1337
        %v1339 = vmul.f32 %v1298, 1.442695
        %v1340 = vpow.pop %v1339
        %v1341 = vmul.f32 %v1299, 1.442695
        %v1342 = vpow.pop %v1341
        %v1343 = vmul.f32 %v1300, 1.442695
        %v1344 = vpow.pop %v1343
        %v1345 = vmul.f32 %v1301, 1.442695
        %v1346 = vpow.pop %v1345
        %v1347 = vmul.f32 %v1302, 1.442695
        %v1348 = vpow.pop %v1347
        %v1349 = vmul.f32 %v1303, 1.442695
        %v1350 = vpow.pop %v1349
        %v1351 = vmul.f32 %v1304, 1.442695
        %v1352 = vpow.pop %v1351
        %v1353 = vmul.f32 %v1305, 1.442695
        %v1354 = vpow.pop %v1353
        %v1355 = vmul.f32 %v1306, 1.442695
        %v1356 = vpow.pop %v1355
        %v1357 = vmul.f32 %v1307, 1.442695
        %v1358 = vpow.pop %v1357
        %v1359 = vmul.f32 %v1308, 1.442695
        %v1360 = vpow.pop %v1359
        %v1361 = vmul.f32 %v1309, 1.442695
        %v1362 = vpow.pop %v1361
        %v1363 = vmul.f32 %v1310, 1.442695
        %v1364 = vpow.pop %v1363
        %v1365 = vmul.f32 %v1311, 1.442695
        %v1366 = vpow.pop %v1365
        %v1367 = vmul.f32 %v1312, 1.442695
        %v1368 = vpow.pop %v1367
        %v1369 = vmul.f32 %v1313, 1.442695
        %v1370 = vpow.pop %v1369
        %v1371 = vmul.f32 %v1314, 1.442695
        %v1372 = vpow.pop %v1371
        %v1373 = vmul.f32 %v1315, 1.442695
        %v1374 = vpow.pop %v1373
        %v1375 = vmul.f32 %v1316, 1.442695
        %v1376 = vpow.pop %v1375
        %v1377 = vmul.f32 %v1317, 1.442695
        %v1378 = vpow.pop %v1377
        %v1379 = vmul.f32 %v1318, 1.442695
        %v1380 = vpow.pop %v1379
        %v1381 = vmul.f32 %v1319, 1.442695
        %v1382 = vpow.pop %v1381
        %v1383 = vmul.f32 %v1320, 1.442695
        %v1384 = vpow.pop %v1383
        %v1385 = vadd.f32 %v1322, %v1324
        %1386 = vadd.xlane.f32.xlu0 %v1385
        %v1387 = vpop.xlane.xlu0 %1386
        %v1388 = vadd.f32 %v1326, %v1328
        %1389 = vadd.xlane.f32.xlu0 %v1388
        %v1390 = vpop.xlane.xlu0 %1389
        %v1391 = vadd.f32 %v1330, %v1332
        %1392 = vadd.xlane.f32.xlu0 %v1391
        %v1393 = vpop.xlane.xlu0 %1392
        %v1394 = vadd.f32 %v1334, %v1336
        %1395 = vadd.xlane.f32.xlu0 %v1394
        %v1396 = vpop.xlane.xlu0 %1395
        %v1397 = vadd.f32 %v1338, %v1340
        %1398 = vadd.xlane.f32.xlu0 %v1397
        %v1399 = vpop.xlane.xlu0 %1398
        %v1400 = vadd.f32 %v1342, %v1344
        %1401 = vadd.xlane.f32.xlu0 %v1400
        %v1402 = vpop.xlane.xlu0 %1401
        %v1403 = vadd.f32 %v1346, %v1348
        %1404 = vadd.xlane.f32.xlu0 %v1403
        %v1405 = vpop.xlane.xlu0 %1404
        %v1406 = vadd.f32 %v1350, %v1352
        %1407 = vadd.xlane.f32.xlu0 %v1406
        %v1408 = vpop.xlane.xlu0 %1407
        %v1409 = vadd.f32 %v1354, %v1356
        %1410 = vadd.xlane.f32.xlu0 %v1409
        %v1411 = vpop.xlane.xlu0 %1410
        %v1412 = vadd.f32 %v1358, %v1360
        %1413 = vadd.xlane.f32.xlu0 %v1412
        %v1414 = vpop.xlane.xlu0 %1413
        %v1415 = vadd.f32 %v1362, %v1364
        %1416 = vadd.xlane.f32.xlu0 %v1415
        %v1417 = vpop.xlane.xlu0 %1416
        %v1418 = vadd.f32 %v1366, %v1368
        %1419 = vadd.xlane.f32.xlu0 %v1418
        %v1420 = vpop.xlane.xlu0 %1419
        %v1421 = vadd.f32 %v1370, %v1372
        %1422 = vadd.xlane.f32.xlu0 %v1421
        %v1423 = vpop.xlane.xlu0 %1422
        %v1424 = vadd.f32 %v1374, %v1376
        %1425 = vadd.xlane.f32.xlu0 %v1424
        %v1426 = vpop.xlane.xlu0 %1425
        %v1427 = vadd.f32 %v1378, %v1380
        %1428 = vadd.xlane.f32.xlu0 %v1427
        %v1429 = vpop.xlane.xlu0 %1428
        %v1430 = vadd.f32 %v1382, %v1384
        %1431 = vadd.xlane.f32.xlu0 %v1430
        %v1432 = vpop.xlane.xlu0 %1431
        %v1433 = vrcp.pop %v1387
        %v1434 = vrcp.pop %v1390
        %v1435 = vrcp.pop %v1393
        %v1436 = vrcp.pop %v1396
        %v1437 = vrcp.pop %v1399
        %v1438 = vrcp.pop %v1402
        %v1439 = vrcp.pop %v1405
        %v1440 = vrcp.pop %v1408
        %v1441 = vrcp.pop %v1411
        %v1442 = vrcp.pop %v1414
        %v1443 = vrcp.pop %v1417
        %v1444 = vrcp.pop %v1420
        %v1445 = vrcp.pop %v1423
        %v1446 = vrcp.pop %v1426
        %v1447 = vrcp.pop %v1429
        %v1448 = vrcp.pop %v1432
        %v1449 = vmul.f32 %v1322, %v1433
        %v1450 = vmul.f32 %v1324, %v1433
        %v1451 = vmul.f32 %v1326, %v1434
        %v1452 = vmul.f32 %v1328, %v1434
        %v1453 = vmul.f32 %v1330, %v1435
        %v1454 = vmul.f32 %v1332, %v1435
        %v1455 = vmul.f32 %v1334, %v1436
        %v1456 = vmul.f32 %v1336, %v1436
        %v1457 = vmul.f32 %v1338, %v1437
        %v1458 = vmul.f32 %v1340, %v1437
        %v1459 = vmul.f32 %v1342, %v1438
        %v1460 = vmul.f32 %v1344, %v1438
        %v1461 = vmul.f32 %v1346, %v1439
        %v1462 = vmul.f32 %v1348, %v1439
        %v1463 = vmul.f32 %v1350, %v1440
        %v1464 = vmul.f32 %v1352, %v1440
        %v1465 = vmul.f32 %v1354, %v1441
        %v1466 = vmul.f32 %v1356, %v1441
        %v1467 = vmul.f32 %v1358, %v1442
        %v1468 = vmul.f32 %v1360, %v1442
        %v1469 = vmul.f32 %v1362, %v1443
        %v1470 = vmul.f32 %v1364, %v1443
        %v1471 = vmul.f32 %v1366, %v1444
        %v1472 = vmul.f32 %v1368, %v1444
        %v1473 = vmul.f32 %v1370, %v1445
        %v1474 = vmul.f32 %v1372, %v1445
        %v1475 = vmul.f32 %v1374, %v1446
        %v1476 = vmul.f32 %v1376, %v1446
        %v1477 = vmul.f32 %v1378, %v1447
        %v1478 = vmul.f32 %v1380, %v1447
        %v1479 = vmul.f32 %v1382, %v1448
        %v1480 = vmul.f32 %v1384, %v1448
        %1481 = vst [vmem:[%s378] sm:$0xff] %v1449
        %1482 = vst [vmem:[%s378 + $0x8] sm:$0xff] %v1450
        %1483 = vst [vmem:[%s378 + $0x10] sm:$0xff] %v1451
        %1484 = vst [vmem:[%s378 + $0x18] sm:$0xff] %v1452
        %1485 = vst [vmem:[%s378 + $0x20] sm:$0xff] %v1453
        %1486 = vst [vmem:[%s378 + $0x28] sm:$0xff] %v1454
        %1487 = vst [vmem:[%s378 + $0x30] sm:$0xff] %v1455
        %1488 = vst [vmem:[%s378 + $0x38] sm:$0xff] %v1456
        %1489 = vst [vmem:[%s378 + $0x40] sm:$0xff] %v1457
        %1490 = vst [vmem:[%s378 + $0x48] sm:$0xff] %v1458
        %1491 = vst [vmem:[%s378 + $0x50] sm:$0xff] %v1459
        %1492 = vst [vmem:[%s378 + $0x58] sm:$0xff] %v1460
        %1493 = vst [vmem:[%s378 + $0x60] sm:$0xff] %v1461
        %1494 = vst [vmem:[%s378 + $0x68] sm:$0xff] %v1462
        %1495 = vst [vmem:[%s378 + $0x70] sm:$0xff] %v1463
        %1496 = vst [vmem:[%s378 + $0x78] sm:$0xff] %v1464
        %1497 = vst [vmem:[%s378 + $0x80] sm:$0xff] %v1465
        %1498 = vst [vmem:[%s378 + $0x88] sm:$0xff] %v1466
        %1499 = vst [vmem:[%s378 + $0x90] sm:$0xff] %v1467
        %1500 = vst [vmem:[%s378 + $0x98] sm:$0xff] %v1468
        %1501 = vst [vmem:[%s378 + $0xa0] sm:$0xff] %v1469
        %1502 = vst [vmem:[%s378 + $0xa8] sm:$0xff] %v1470
        %1503 = vst [vmem:[%s378 + $0xb0] sm:$0xff] %v1471
        %1504 = vst [vmem:[%s378 + $0xb8] sm:$0xff] %v1472
        %1505 = vst [vmem:[%s378 + $0xc0] sm:$0xff] %v1473
        %1506 = vst [vmem:[%s378 + $0xc8] sm:$0xff] %v1474
        %1507 = vst [vmem:[%s378 + $0xd0] sm:$0xff] %v1475
        %1508 = vst [vmem:[%s378 + $0xd8] sm:$0xff] %v1476
        %1509 = vst [vmem:[%s378 + $0xe0] sm:$0xff] %v1477
        %1510 = vst [vmem:[%s378 + $0xe8] sm:$0xff] %v1478
        %1511 = vst [vmem:[%s378 + $0xf0] sm:$0xff] %v1479
        %1512 = vst [vmem:[%s378 + $0xf8] sm:$0xff] %v1480
        %s1513 = sand.u32 %s176, 1
        %s1514 = scalar_lea.sflag [#allocation4], %s1513
        %s1515 = sand.u32 %s176, 1
        %s1516 = smul.addr %s1515, 256
        %s1517 = scalar_lea.vmem [#allocation10], %s1516
        %s1518 = sand.u32 %s202, 1
        %s1519 = scalar_lea.sflag [#allocation12], %s1518
        %s1520 = sand.u32 %s202, 1
        %s1521 = smul.addr %s1520, 256
        %s1522 = scalar_lea.vmem [#allocation11], %s1521
        // Predicated region
        $region61: #{tpu_custom_call.1} parent=43 // pred_check
          %p1523 = pneg %p186
        $region62: #{tpu_custom_call.1} parent=43 // pred_check_branch
          %1525 = sbr.rel (%p1523) target = $region64
        $region63: #{tpu_custom_call.1} parent=43 // pred_region
          %s1526 = smul.u32 16, %s32
          %s1528 = ssub.s32 4096, 4096
          %1529 = vsyncadd %s1514, %s1528
          %s1530 = smul.addr %s1526, 2
          %s1531 = smul.addr %s1530, 128
          %s1532 = scalar_lea.hbm %s6, %s1531
          %s1533 = sshll.u32 %s1517, 4
          %s1534 = int_to_ptr.vmem [resolvable:$true] %s1533
          %1539 = dma.vmem_to_hbm [thread:$0]  %s1534, 4096, %s1532, %s1514, 256, 256, 16
        $region64: #{tpu_custom_call.1} parent=43 // pred_fallthru
          _
        // Predicated region
        $region65: #{tpu_custom_call.1} parent=43 // pred_check
          %p1540 = pneg %p212
        $region66: #{tpu_custom_call.1} parent=43 // pred_check_branch
          %1542 = sbr.rel (%p1540) target = $region68
        $region67: #{tpu_custom_call.1} parent=43 // pred_region
          %s1543 = smul.u32 16, %s32
          %s1545 = ssub.s32 4096, 4096
          %1546 = vsyncadd %s1519, %s1545
          %s1547 = smul.addr %s1543, 2
          %s1548 = smul.addr %s1547, 128
          %s1549 = scalar_lea.hbm %s7, %s1548
          %s1550 = sshll.u32 %s1522, 4
          %s1551 = int_to_ptr.vmem [resolvable:$true] %s1550
          %1556 = dma.vmem_to_hbm [thread:$0]  %s1551, 4096, %s1549, %s1519, 256, 256, 16
        $region68: #{tpu_custom_call.1} parent=43 // pred_fallthru
          _
      $region44: #{tpu_custom_call.1} parent=5 // pred_fallthru
        _
      %p1557 = scmp.le.s32.totalorder 2, %s27
      // Predicated region
      $region69: #{tpu_custom_call.1} parent=5 // pred_check
        %p1558 = pneg %p1557
      $region70: #{tpu_custom_call.1} parent=5 // pred_check_branch
        %1560 = sbr.rel (%p1558) target = $region72
      $region71: #{tpu_custom_call.1} parent=5 // pred_region
        %s1561 = ssub.s32 %s27, 2
        // Predicated region
        $region73: #{tpu_custom_call.1} parent=71 // pred_check
          %p1562 = pneg %p192
        $region74: #{tpu_custom_call.1} parent=71 // pred_check_branch
          %1564 = sbr.rel (%p1562) target = $region76
        $region75: #{tpu_custom_call.1} parent=71 // pred_region
          %s1565 = sand.u32 %s177, 1
          %s1566 = scalar_lea.sflag [#allocation4], %s1565
          %s1567 = sand.u32 %s177, 1
          %s1568 = smul.addr %s1567, 256
          %s1569 = scalar_lea.vmem [#allocation10], %s1568
          %1570 = dma.done %s1566, 4096
        $region76: #{tpu_custom_call.1} parent=71 // pred_fallthru
          _
        // Predicated region
        $region77: #{tpu_custom_call.1} parent=71 // pred_check
          %p1571 = pneg %p218
        $region78: #{tpu_custom_call.1} parent=71 // pred_check_branch
          %1573 = sbr.rel (%p1571) target = $region80
        $region79: #{tpu_custom_call.1} parent=71 // pred_region
          %s1574 = sand.u32 %s203, 1
          %s1575 = scalar_lea.sflag [#allocation12], %s1574
          %s1576 = sand.u32 %s203, 1
          %s1577 = smul.addr %s1576, 256
          %s1578 = scalar_lea.vmem [#allocation11], %s1577
          %1579 = dma.done %s1575, 4096
        $region80: #{tpu_custom_call.1} parent=71 // pred_fallthru
          _
      $region72: #{tpu_custom_call.1} parent=5 // pred_fallthru
        _
    $region6: #{tpu_custom_call.1} parent=1 // loop_footer
      %s31 = sadd.s32 1, %s27
    $region7: #{tpu_custom_call.1} parent=1 // loop_footer_branch
      %26 = sbr.rel target = $region3
    $region8: #{tpu_custom_call.1} parent=1 // loop_exit
      _
    %1580 = vsyncpa [#allocation3], 1
    %s1581 = scalar_lea.sflag [#allocation3], 1
    %1582 = vsyncpa %s1581, 1
    %1583 = vsyncpa [#allocation6], 1
    %s1584 = scalar_lea.sflag [#allocation6], 1
    %1585 = vsyncpa %s1584, 1
    %1586 = vsyncpa [#allocation9], 1
    %1587 = vsyncpa [#allocation4], 1
    %s1588 = scalar_lea.sflag [#allocation4], 1
    %1589 = vsyncpa %s1588, 1
    %1590 = vsyncpa [#allocation12], 1
    %s1591 = scalar_lea.sflag [#allocation12], 1
    %1592 = vsyncpa %s1591, 1

</llo_original>
